<compile_context>
chip_gen: v6e
topology: v6e:2x2x1
jax: 0.10.0
libtpu: 0.0.40
codegen_flags: <defaults>
</compile_context>

<pallas_src>
import math

import jax
import jax.numpy as jnp
import numpy as np
from jax.experimental import pallas as pl
from jax.experimental.pallas import tpu as pltpu


# ----------------------------------------------------------------------------
# Kernel A: backbone stand-in + pooling + fc/BN + L2-normalize
# ----------------------------------------------------------------------------
def make_feature_kernel(*, hw):
    inv_hw = 1.0 / float(hw)   # mean over the REAL spatial size

    def kernel(x_ref, wbb_ref, wfcs_ref, shift_ref, xn_ref, acc_ref):
        # x_ref:    (C, TN*HWc)  lane-dense spatial chunk of TN samples (bf16/f32)
        # wbb_ref:  (F, C)       stand-in 1x1-conv backbone weight
        # wfcs_ref: (F, FC)      fc weight^T with BN scale folded per column
        # shift_ref:(1, FC)      folded fc-bias + BN shift (f32)
        # xn_ref:   (TN, FC)     output: L2-normalized embedding (last chunk only)
        # acc_ref:  (F, TN) f32  pooled-sum accumulator across HW chunks
        hi = pl.program_id(1)

        @pl.when(hi == 0)
        def _():
            acc_ref[...] = jnp.zeros_like(acc_ref)

        f_dim, tn = acc_ref.shape
        hwc = x_ref.shape[1] // tn

        # Stand-in backbone: 1x1 conv + ReLU as one (F, C) @ (C, TN*HWc) matmul.
        fmap = jnp.dot(wbb_ref[...], x_ref[...],
                       preferred_element_type=jnp.float32)            # (F, TN*HWc)
        fmap = jnp.maximum(fmap, 0.0)
        # AdaptiveAvgPool2d(1) partial sum: lane-reduce each sample's HWc slice.
        acc_ref[...] += jnp.sum(fmap.reshape(f_dim, tn, hwc), axis=2)  # (F, TN)

        @pl.when(hi == pl.num_programs(1) - 1)
        def _():
            # Mean over the real HW (zero-padded positions contribute ReLU(W@0)=0).
            pooled = (acc_ref[...] * inv_hw).T.astype(wfcs_ref.dtype)  # (TN, F)
            # dropout(p=0.0) == identity; fc + BatchNorm1d(inference) folded into
            # (pre-scaled weight) @ x + shift.
            feat = jnp.dot(pooled, wfcs_ref[...],
                           preferred_element_type=jnp.float32) + shift_ref[...]
            # F.normalize(input): x / max(||x||, 1e-12)  (rsqrt -> EUP slot).
            ssq = jnp.sum(feat * feat, axis=1, keepdims=True)
            xn_ref[...] = (feat * jax.lax.rsqrt(jnp.maximum(ssq, 1e-24))
                           ).astype(xn_ref.dtype)

    return kernel


# ----------------------------------------------------------------------------
# Kernel B: ArcMarginProduct on (TN, TNC) class tiles
# ----------------------------------------------------------------------------
def make_arcface_kernel(*, s, m, ls_eps, n_classes):
    cos_m = math.cos(m)
    sin_m = math.sin(m)
    th = math.cos(math.pi - m)
    mmargin = math.sin(math.pi - m) * m

    def kernel(xn_ref, warcT_ref, label_ref, out_ref):
        ci = pl.program_id(0)
        tile_nc = out_ref.shape[1]

        # warcT_ref is row-normalized once in the wrapper (F.normalize(weight)).
        cosine = jnp.dot(xn_ref[...], warcT_ref[...],
                         preferred_element_type=jnp.float32)          # (TN, TNC)
        cols = jax.lax.broadcasted_iota(jnp.int32, (1, tile_nc), 1) + ci * tile_nc
        is_tgt = cols == label_ref[...]                               # (TN, TNC)

        if ls_eps > 0.0:
            # Label smoothing needs the full blend.
            sine = jnp.sqrt(jnp.maximum(1.0 - cosine * cosine, 0.0))
            phi = cosine * cos_m - sine * sin_m
            phi = jnp.where(cosine > th, phi, cosine - mmargin)       # easy_margin=False
            one_hot = (1.0 - ls_eps) * is_tgt.astype(jnp.float32) + ls_eps / n_classes
            out_ref[...] = (one_hot * phi + (1.0 - one_hot) * cosine) * s
        else:
            # ls_eps == 0 fast path: everything except the per-row target logit
            # is just s*cosine; run the margin math only on that one value/row.
            tgt = jnp.sum(jnp.where(is_tgt, cosine, 0.0),
                          axis=1, keepdims=True)                      # (TN, 1)
            sine_t = jnp.sqrt(jnp.maximum(1.0 - tgt * tgt, 0.0))
            phi_t = tgt * cos_m - sine_t * sin_m
            phi_t = jnp.where(tgt > th, phi_t, tgt - mmargin)
            out_ref[...] = jnp.where(is_tgt, phi_t, cosine) * s

    return kernel


# ----------------------------------------------------------------------------
# Wrapper
# ----------------------------------------------------------------------------
def _round_up(v, mult):
    return ((v + mult - 1) // mult) * mult


def shopee_forward(x_nchw, params, label, *, s=30.0, m=0.5, ls_eps=0.0,
                   bn_eps=1e-5, matmul_dtype=jnp.bfloat16,
                   batch_tile=128, class_tile=512, hw_chunk=256):
    N, C, H, W = x_nchw.shape
    HW = H * W
    F_ = params["wbb"].shape[0]
    FC = params["wfc"].shape[0]
    NC = params["warc"].shape[0]

    # Batch tile: >= 8 rows (f32 sublanes).  Class tile: multiple of 128
    # (lane-dense unmasked stores).  HW chunk: multiple of 128 lanes; the
    # per-chunk fmap intermediate is F * TN * HWC f32, so shrink hw_chunk /
    # batch_tile for large F (e.g. realistic backbones) or v7x's 64 MiB VMEM.
    TN = min(batch_tile, _round_up(N, 8))
    N_pad = _round_up(N, TN)
    TNC = min(class_tile, _round_up(NC, 128))
    NC_pad = _round_up(NC, TNC)
    HWC = min(_round_up(hw_chunk, 128), _round_up(HW, 128))
    HW_pad = _round_up(HW, HWC)
    n_hw = HW_pad // HWC

    # ---- wrapper-side layout plumbing & parameter folding (one-time XLA ops) ----
    # Images: NCHW -> (n_hw_chunks, C, N_pad*HWC) so the kernel's x block is
    # lane-dense in the (large) spatial dim and chunk-addressable per grid step.
    x_f = x_nchw.reshape(N, C, HW).astype(matmul_dtype)
    x_p = jnp.zeros((N_pad, C, HW_pad), matmul_dtype).at[:N, :, :HW].set(x_f)
    x_p = (x_p.reshape(N_pad, C, n_hw, HWC)
              .transpose(2, 1, 0, 3)
              .reshape(n_hw, C, N_pad * HWC))

    wbb = params["wbb"].astype(matmul_dtype)                              # (F, C)

    # fc + BatchNorm1d (inference): fold BN scale into the fc weight columns and
    # bias/mean/beta into one shift -> kernel only does matmul + add.
    bn_scale = params["gamma"] * jax.lax.rsqrt(params["rvar"] + bn_eps)   # (1, FC)
    wfcs_t = (params["wfc"].T * bn_scale).astype(matmul_dtype)            # (F, FC)
    bn_shift = ((params["bfc"] - params["rmean"]) * bn_scale
                + params["beta"]).astype(jnp.float32)                     # (1, FC)

    # ArcFace weight: F.normalize(weight) once, transposed & class-padded.
    warc_n = params["warc"] / jnp.maximum(
        jnp.linalg.norm(params["warc"], axis=1, keepdims=True), 1e-12)
    warc_t = jnp.zeros((FC, NC_pad), matmul_dtype).at[:, :NC].set(
        warc_n.T.astype(matmul_dtype))
    label_p = jnp.zeros((N_pad, 1), jnp.int32).at[:N, 0].set(
        label.astype(jnp.int32))

    # ---- Kernel A: features (grid: batch tiles x HW chunks) ----
    xn = pl.pallas_call(
        make_feature_kernel(hw=HW),
        out_shape=jax.ShapeDtypeStruct((N_pad, FC), matmul_dtype),
        grid=(N_pad // TN, n_hw),
        in_specs=[
            pl.BlockSpec((None, C, TN * HWC), lambda bi, hi: (hi, 0, bi)),  # images
            pl.BlockSpec((F_, C), lambda bi, hi: (0, 0)),                   # backbone W
            pl.BlockSpec((F_, FC), lambda bi, hi: (0, 0)),                  # fc W^T * BN scale
            pl.BlockSpec((1, FC), lambda bi, hi: (0, 0)),                   # folded shift
        ],
        out_specs=pl.BlockSpec((TN, FC), lambda bi, hi: (bi, 0)),
        scratch_shapes=[pltpu.VMEM((F_, TN), jnp.float32)],                 # pooled sums
        compiler_params=pltpu.CompilerParams(
            dimension_semantics=("parallel", "arbitrary")),
    )(x_p, wbb, wfcs_t, bn_shift)

    # ---- Kernel B: ArcFace (grid: class tiles slow x batch tiles fast) ----
    # warc's index_map ignores the inner (batch) axis -> each class-weight tile
    # is fetched from HBM exactly once.
    out = pl.pallas_call(
        make_arcface_kernel(s=s, m=m, ls_eps=ls_eps, n_classes=NC),
        out_shape=jax.ShapeDtypeStruct((N_pad, NC_pad), jnp.float32),
        grid=(NC_pad // TNC, N_pad // TN),
        in_specs=[
            pl.BlockSpec((TN, FC), lambda ci, bi: (bi, 0)),                 # normalized feats
            pl.BlockSpec((FC, TNC), lambda ci, bi: (0, ci)),                # normalized arc W^T
            pl.BlockSpec((TN, 1), lambda ci, bi: (bi, 0)),                  # labels
        ],
        out_specs=pl.BlockSpec((TN, TNC), lambda ci, bi: (bi, ci)),
        compiler_params=pltpu.CompilerParams(
            dimension_semantics=("parallel", "parallel")),
    )(xn, warc_t, label_p)

    return out[:N, :NC]


# ----------------------------------------------------------------------------
# Pure-JAX reference (PyTorch-equivalent math; mirrors the matmul-dtype casts).
# ----------------------------------------------------------------------------
def shopee_reference(x_nchw, params, label, *, s=30.0, m=0.5, ls_eps=0.0,
                     bn_eps=1e-5, matmul_dtype=jnp.bfloat16):
    N, C, H, W = x_nchw.shape
    HW = H * W
    dt = matmul_dtype
    NC = params["warc"].shape[0]

    x = jnp.transpose(x_nchw, (0, 2, 3, 1)).reshape(N * HW, C).astype(dt)
    fmap = jnp.maximum(jnp.dot(x, params["wbb"].T.astype(dt),
                               preferred_element_type=jnp.float32), 0.0)
    pooled = jnp.mean(fmap.reshape(N, HW, -1), axis=1)                   # (N, F)
    feat = jnp.dot(pooled.astype(dt), params["wfc"].T.astype(dt),
                   preferred_element_type=jnp.float32) + params["bfc"]
    feat = ((feat - params["rmean"]) * params["gamma"]
            / jnp.sqrt(params["rvar"] + bn_eps) + params["beta"])
    xn = feat / jnp.maximum(jnp.linalg.norm(feat, axis=1, keepdims=True), 1e-12)
    wn = params["warc"] / jnp.maximum(
        jnp.linalg.norm(params["warc"], axis=1, keepdims=True), 1e-12)
    cosine = jnp.dot(xn.astype(dt), wn.T.astype(dt),
                     preferred_element_type=jnp.float32)
    sine = jnp.sqrt(jnp.maximum(1.0 - cosine ** 2, 0.0))
    cos_m, sin_m = math.cos(m), math.sin(m)
    th, mmargin = math.cos(math.pi - m), math.sin(math.pi - m) * m
    phi = cosine * cos_m - sine * sin_m
    phi = jnp.where(cosine > th, phi, cosine - mmargin)
    one_hot = jax.nn.one_hot(label, NC, dtype=jnp.float32)
    if ls_eps > 0:
        one_hot = (1 - ls_eps) * one_hot + ls_eps / NC
    return (one_hot * phi + (1.0 - one_hot) * cosine) * s


# ----------------------------------------------------------------------------
# Deterministic parameter init (mirrors the module's __init__ choices)
# ----------------------------------------------------------------------------
def init_params(key, *, c_in, feat, fc_dim, n_classes):
    k_bb, k_fc, k_arc = jax.random.split(key, 3)

    def xavier_uniform(k, shape):
        fan_out, fan_in = shape
        bound = math.sqrt(6.0 / (fan_in + fan_out))
        return jax.random.uniform(k, shape, jnp.float32, -bound, bound)

    def xavier_normal(k, shape):
        fan_out, fan_in = shape
        std = math.sqrt(2.0 / (fan_in + fan_out))
        return std * jax.random.normal(k, shape, jnp.float32)

    return {
        "wbb": xavier_uniform(k_bb, (feat, c_in)),           # backbone stand-in
        "wfc": xavier_normal(k_fc, (fc_dim, feat)),          # nn.init.xavier_normal_
        "bfc": jnp.zeros((1, fc_dim), jnp.float32),          # constant_(bias, 0)
        "gamma": jnp.ones((1, fc_dim), jnp.float32),         # constant_(bn.weight, 1)
        "beta": jnp.zeros((1, fc_dim), jnp.float32),         # constant_(bn.bias, 0)
        "rmean": jnp.zeros((1, fc_dim), jnp.float32),
        "rvar": jnp.ones((1, fc_dim), jnp.float32),
        "warc": xavier_uniform(k_arc, (n_classes, fc_dim)),  # ArcMargin xavier_uniform_
    }


if __name__ == "__main__":
    key = jax.random.PRNGKey(0)
    k_x, k_lbl, k_params = jax.random.split(key, 3)

    # Small shapes: batch=2, in-channels=4, spatial 16x16, final_in_features=32,
    # fc_dim=32, n_classes=200 (pads to 256 classes).
    N, C, H, W = 2, 4, 16, 16
    FEAT, FC_DIM, N_CLASSES = 32, 32, 200

    x = jax.random.normal(k_x, (N, C, H, W), jnp.float32)
    label = jax.random.randint(k_lbl, (N,), 0, N_CLASSES, jnp.int32)
    params = init_params(k_params, c_in=C, feat=FEAT, fc_dim=FC_DIM,
                         n_classes=N_CLASSES)

    # f32 matmul path with small tiles: exercises the HW-chunk grid axis
    # (2 chunks) and the class-tile grid axis (2 tiles); strict check against
    # the PyTorch-equivalent math.
    out_f32 = jax.block_until_ready(
        shopee_forward(x, params, label, matmul_dtype=jnp.float32,
                       class_tile=128, hw_chunk=128))
    ref_f32 = shopee_reference(x, params, label, matmul_dtype=jnp.float32)
    np.testing.assert_allclose(np.asarray(out_f32), np.asarray(ref_f32),
                               rtol=5e-4, atol=5e-4)

    # f32 path with label smoothing: exercises the ls_eps > 0 branch.
    out_ls = jax.block_until_ready(
        shopee_forward(x, params, label, ls_eps=0.1, matmul_dtype=jnp.float32,
                       class_tile=128, hw_chunk=128))
    ref_ls = shopee_reference(x, params, label, ls_eps=0.1,
                              matmul_dtype=jnp.float32)
    np.testing.assert_allclose(np.asarray(out_ls), np.asarray(ref_ls),
                               rtol=5e-4, atol=5e-4)

    # bf16 matmul path (default, full MXU rate): sanity check.  The reference
    # mirrors the matmul casts but not the wrapper-side BN-scale folding, so
    # tolerances are bf16-level.
    out_bf16 = jax.block_until_ready(shopee_forward(x, params, label))
    ref_bf16 = shopee_reference(x, params, label)
    np.testing.assert_allclose(np.asarray(out_bf16), np.asarray(ref_bf16),
                               rtol=2e-2, atol=4e-2)

    print("KERNEL_OK")
</pallas_src>

<mosaic_0001>
module attributes {stable_mosaic.version = 11 : i64} {
  func.func @kernel(%arg0: i32, %arg1: i32, %arg2: memref<1x4x1024xf32, #tpu.memory_space<vmem>>, %arg3: memref<32x4xf32, #tpu.memory_space<vmem>>, %arg4: memref<32x32xf32, #tpu.memory_space<vmem>>, %arg5: memref<1x32xf32, #tpu.memory_space<vmem>>, %arg6: memref<8x32xf32, #tpu.memory_space<vmem>>, %arg7: memref<32x8xf32, #tpu.memory_space<vmem>>) attributes {dimension_semantics = [#tpu.dimension_semantics<parallel>, #tpu.dimension_semantics<arbitrary>], iteration_bounds = array<i64: 1, 2>, scalar_prefetch = 0 : i64, scratch_operands = 1 : i64, tpu.core_type = #tpu.core_type<tc>, window_params = [{transform_indices = @transform_0, window_bounds = array<i64: 1, 4, 1024>}, {pipeline_mode = #tpu.pipeline_mode<synchronous>, transform_indices = @transform_1, window_bounds = array<i64: 32, 4>}, {pipeline_mode = #tpu.pipeline_mode<synchronous>, transform_indices = @transform_2, window_bounds = array<i64: 32, 32>}, {pipeline_mode = #tpu.pipeline_mode<synchronous>, transform_indices = @transform_3, window_bounds = array<i64: 1, 32>}, {transform_indices = @transform_4, window_bounds = array<i64: 8, 32>}]} {
    %c0_i32 = arith.constant 0 : i32
    %0 = arith.cmpi eq, %arg1, %c0_i32 : i32
    %1 = arith.extui %0 : i1 to i32
    %c0_i32_0 = arith.constant 0 : i32
    %2 = arith.cmpi ne, %1, %c0_i32_0 : i32
    scf.if %2 {
      %cst_12 = arith.constant 0.000000e+00 : f32
      %17 = vector.broadcast %cst_12 : f32 to vector<32x8xf32>
      %c0_13 = arith.constant 0 : index
      %c0_14 = arith.constant 0 : index
      %18 = vector.load %arg7[%c0_13, %c0_14] : memref<32x8xf32, #tpu.memory_space<vmem>>, vector<32x8xf32>
      tpu.vector_store %arg7[%c0_13, %c0_14], %17 {strides = array<i32>} : memref<32x8xf32, #tpu.memory_space<vmem>>, vector<32x8xf32>,
    } else {
    }
    %c0 = arith.constant 0 : index
    %c0_1 = arith.constant 0 : index
    %3 = vector.load %arg3[%c0, %c0_1] : memref<32x4xf32, #tpu.memory_space<vmem>>, vector<32x4xf32>
    %c0_2 = arith.constant 0 : index
    %c0_3 = arith.constant 0 : index
    %c0_4 = arith.constant 0 : index
    %4 = vector.load %arg2[%c0_2, %c0_3, %c0_4] : memref<1x4x1024xf32, #tpu.memory_space<vmem>>, vector<1x4x1024xf32>
    %5 = vector.shape_cast %4 : vector<1x4x1024xf32> to vector<4x1024xf32>
    %cst = arith.constant dense<0.000000e+00> : vector<32x1024xf32>
    %6 = tpu.matmul %3, %5, %cst {dimension_numbers = #tpu.dot_dimension_numbers<[1], [0], [0], [1], [0, 0, 1, 1], [], []>} : vector<32x4xf32>, vector<4x1024xf32>, vector<32x1024xf32> -> vector<32x1024xf32>
    %cst_5 = arith.constant 0.000000e+00 : f32
    %7 = vector.broadcast %cst_5 : f32 to vector<32x1024xf32>
    %8 = arith.maximumf %6, %7 : vector<32x1024xf32>
    %c0_6 = arith.constant 0 : index
    %c0_7 = arith.constant 0 : index
    %9 = vector.load %arg7[%c0_6, %c0_7] : memref<32x8xf32, #tpu.memory_space<vmem>>, vector<32x8xf32>
    %10 = vector.shape_cast %8 : vector<32x1024xf32> to vector<32x8x128xf32>
    %cst_8 = arith.constant dense<0.000000e+00> : vector<32x8xf32>
    %11 = vector.multi_reduction <add>, %10, %cst_8 [2] : vector<32x8x128xf32> to vector<32x8xf32>
    %12 = arith.addf %9, %11 : vector<32x8xf32>
    %c0_9 = arith.constant 0 : index
    %c0_10 = arith.constant 0 : index
    %13 = vector.load %arg7[%c0_9, %c0_10] : memref<32x8xf32, #tpu.memory_space<vmem>>, vector<32x8xf32>
    tpu.vector_store %arg7[%c0_9, %c0_10], %12 {strides = array<i32>} : memref<32x8xf32, #tpu.memory_space<vmem>>, vector<32x8xf32>,
    %c1_i32 = arith.constant 1 : i32
    %14 = arith.cmpi eq, %arg1, %c1_i32 : i32
    %15 = arith.extui %14 : i1 to i32
    %c0_i32_11 = arith.constant 0 : i32
    %16 = arith.cmpi ne, %15, %c0_i32_11 : i32
    scf.if %16 {
      %c0_12 = arith.constant 0 : index
      %c0_13 = arith.constant 0 : index
      %17 = vector.load %arg7[%c0_12, %c0_13] : memref<32x8xf32, #tpu.memory_space<vmem>>, vector<32x8xf32>
      %cst_14 = arith.constant 3.906250e-03 : f32
      %18 = vector.broadcast %cst_14 : f32 to vector<32x8xf32>
      %19 = arith.mulf %17, %18 : vector<32x8xf32>
      %20 = tpu.transpose %19, [1, 0] : vector<32x8xf32> -> vector<8x32xf32>
      %c0_15 = arith.constant 0 : index
      %c0_16 = arith.constant 0 : index
      %21 = vector.load %arg4[%c0_15, %c0_16] : memref<32x32xf32, #tpu.memory_space<vmem>>, vector<32x32xf32>
      %cst_17 = arith.constant dense<0.000000e+00> : vector<8x32xf32>
      %22 = tpu.matmul %20, %21, %cst_17 {dimension_numbers = #tpu.dot_dimension_numbers<[1], [0], [0], [1], [0, 0, 1, 1], [], []>} : vector<8x32xf32>, vector<32x32xf32>, vector<8x32xf32> -> vector<8x32xf32>
      %c0_18 = arith.constant 0 : index
      %c0_19 = arith.constant 0 : index
      %23 = vector.load %arg5[%c0_18, %c0_19] : memref<1x32xf32, #tpu.memory_space<vmem>>, vector<1x32xf32>
      %24 = vector.broadcast %23 : vector<1x32xf32> to vector<8x32xf32>
      %25 = arith.addf %22, %24 : vector<8x32xf32>
      %26 = arith.mulf %25, %25 : vector<8x32xf32>
      %cst_20 = arith.constant dense<0.000000e+00> : vector<8xf32>
      %27 = vector.multi_reduction <add>, %26, %cst_20 [1] : vector<8x32xf32> to vector<8xf32>
      %28 = vector.shape_cast %27 : vector<8xf32> to vector<8x1xf32>
      %cst_21 = arith.constant 1.000000e-24 : f32
      %29 = vector.broadcast %cst_21 : f32 to vector<8x1xf32>
      %30 = arith.maximumf %28, %29 : vector<8x1xf32>
      %31 = math.rsqrt %30 : vector<8x1xf32>
      %32 = vector.broadcast %31 : vector<8x1xf32> to vector<8x32xf32>
      %33 = arith.mulf %25, %32 : vector<8x32xf32>
      %c0_22 = arith.constant 0 : index
      %c0_23 = arith.constant 0 : index
      %34 = vector.load %arg6[%c0_22, %c0_23] : memref<8x32xf32, #tpu.memory_space<vmem>>, vector<8x32xf32>
      tpu.vector_store %arg6[%c0_22, %c0_23], %33 {strides = array<i32>} : memref<8x32xf32, #tpu.memory_space<vmem>>, vector<8x32xf32>,
    } else {
    }
    return
  }
  func.func @transform_0(%arg0: i32, %arg1: i32) -> (i32, i32, i32) {
    %c0_i32 = arith.constant 0 : i32
    %c0_i32_0 = arith.constant 0 : i32
    return %arg1, %c0_i32, %arg0 : i32, i32, i32
  }
  func.func @transform_1(%arg0: i32, %arg1: i32) -> (i32, i32) {
    %c0_i32 = arith.constant 0 : i32
    %c0_i32_0 = arith.constant 0 : i32
    %c0_i32_1 = arith.constant 0 : i32
    return %c0_i32, %c0_i32_0 : i32, i32
  }
  func.func @transform_2(%arg0: i32, %arg1: i32) -> (i32, i32) {
    %c0_i32 = arith.constant 0 : i32
    %c0_i32_0 = arith.constant 0 : i32
    %c0_i32_1 = arith.constant 0 : i32
    return %c0_i32, %c0_i32_0 : i32, i32
  }
  func.func @transform_3(%arg0: i32, %arg1: i32) -> (i32, i32) {
    %c0_i32 = arith.constant 0 : i32
    %c0_i32_0 = arith.constant 0 : i32
    %c0_i32_1 = arith.constant 0 : i32
    return %c0_i32, %c0_i32_0 : i32, i32
  }
  func.func @transform_4(%arg0: i32, %arg1: i32) -> (i32, i32) {
    %c0_i32 = arith.constant 0 : i32
    %c0_i32_0 = arith.constant 0 : i32
    return %arg0, %c0_i32 : i32, i32
  }
}

</mosaic_0001>

<llo_original>
// kernel: tpu_custom_call.1
$region0: #{tpu_custom_call.1}
  #allocation0 [shape = 'u32[]', space=smem, size = 0x4, offset = 0x4, fixed_abs, tag = 'smem constant byte address 0x4 - core index']
  #allocation1 [shape = 'u32[144,128]{1,0:T(1,128)}', space=vmem, size = 0x12000, scoped, tag = 'internal scratch']
  #allocation2 [shape = 'f32[32,8]{1,0:T(8,128)}', space=vmem, size = 0x4000, scoped, tag = 'scratch operand']
  %s0 = inlined_call_operand.hbm [shape: f32[2,4,1024], index: 0, kind: input, shape index: {}]
  %s1 = inlined_call_operand.vmem [shape: f32[32,4], index: 1, kind: input, shape index: {}]
  %s2 = inlined_call_operand.vmem [shape: f32[32,32], index: 2, kind: input, shape index: {}]
  %s3 = inlined_call_operand.vmem [shape: f32[1,32], index: 3, kind: input, shape index: {}]
  %s4 = inlined_call_operand.hbm [shape: f32[8,32], index: 4, kind: output, shape index: {}]
  %s5 = sld [smem:[#allocation0]]
  $region61: #{tpu_custom_call.1} parent=0
    _
  %s7 = ssub.s32 1, %s5
  %s8 = scalar_select 0, %s7, %s5
  $region1: #{tpu_custom_call.1} parent=0
    #allocation3 [shape = 'u8[32768]{0}', space=vmem, size = 0x8000, scoped, tag = 'input window, operand 0']
    #allocation4 [shape = 's32[2]{0}', space=sflag, size = 0x8, scoped, tag = 'scoped memory for tpu_custom_call.1']
    #allocation5 [shape = 's32[2]{0}', space=sflag, size = 0x8, scoped, tag = 'scoped memory for tpu_custom_call.1']
    #allocation6 [shape = 'u8[4096]{0}', space=vmem, size = 0x1000, scoped, tag = 'output window, operand 0, single buffered']
    %9 = vsyncpa [#allocation4], 0
    %s10 = scalar_lea.sflag [#allocation4], 1
    %11 = vsyncpa %s10, 0
    %12 = vsyncpa [#allocation5], 0
    loop: start=0, step=1, limit=4
    $region2: #{tpu_custom_call.1} parent=1 // loop_pre_header
      _
    $region3: #{tpu_custom_call.1} parent=1 // loop_header
      %s14 = sphi 0, %s18
      %p15 = scmp.ge.s32.totalorder %s14, 4
      %s21 = sphi 0, %s33
      %s22 = sphi 0, %s29
      %s23 = sphi 0, %s21
      %s24 = sphi 0, %s22
      %s25 = sphi 0, %s23
      %s26 = sphi 0, %s24
      %s38 = sphi 0, %s40
      %s41 = sphi 0, %s38
      %s42 = sphi 0, %s41
      %s58 = sphi 0, %s42
      %s62 = sphi 0, %s62
      %s64 = sphi 0, %s62
      %s65 = sphi 0, %s64
      %s79 = sphi 0, %s65
      %s83 = sphi 0, %s83
      %s85 = sphi 0, %s83
      %s86 = sphi 0, %s85
      %s100 = sphi 0, %s86
      %s104 = sphi 0, %s104
      %s106 = sphi 0, %s104
      %s107 = sphi 0, %s106
      %s121 = sphi 0, %s107
      %s127 = sphi 0, %s129
      %s130 = sphi 0, %s127
      %s131 = sphi 0, %s130
      %s147 = sphi 0, %s131
    $region4: #{tpu_custom_call.1} parent=1 // loop_header_branch
      %17 = sbr.rel (%p15) target = $region8
    $region5: #{tpu_custom_call.1} parent=1 // loop_body
      %s19 = ssub.s32 %s14, 1
      %s20 = ssub.s32 %s14, 2
      %s27 = sadd.s32 1, %s22
      %p28 = scmp.ge.s32.totalorder %s27, 2
      %s29 = scalar_select %p28, 0, %s27
      %s30 = sadd.s32 1, %s21
      %s31 = scalar_select %p28, %s30, %s21
      %p32 = scmp.ge.s32.totalorder %s31, 1
      %s33 = scalar_select %p32, 0, %s31
      %s34 = ssub.s32 %s22, %s29
      %s35 = ssub.s32 %s21, %s33
      %s36 = sor.u32 %s34, %s35
      %p37 = scmp.eq.s32.totalorder %s36, 0
      %s39 = sadd.s32 %s38, 1
      %s40 = scalar_select %p37, %s38, %s39
      %p43 = pneg %p37
      %p44 = scmp.eq.s32.totalorder %s14, 1
      %p45 = por %p43, %p44
      %p46 = scmp.ne.s32.totalorder %s38, %s41
      %p47 = scmp.eq.s32.totalorder %s14, 0
      %p48 = por %p46, %p47
      %p49 = scmp.ne.s32.totalorder %s38, %s41
      %p50 = scmp.eq.s32.totalorder %s19, 1
      %p51 = por %p49, %p50
      %p52 = scmp.ne.s32.totalorder %s41, %s42
      %p53 = scmp.eq.s32.totalorder %s19, 0
      %p54 = por %p52, %p53
      %p55 = scmp.ne.s32.totalorder %s41, %s42
      %p56 = scmp.eq.s32.totalorder %s20, 1
      %p57 = por %p55, %p56
      %p59 = scmp.ne.s32.totalorder %s42, %s58
      %p60 = scmp.eq.s32.totalorder %s20, 0
      %p61 = por %p59, %p60
      %s63 = sadd.s32 %s62, 1
      %p66 = scmp.eq.s32.totalorder %s14, 1
      %p67 = scmp.ne.s32.totalorder %s62, %s64
      %p68 = scmp.eq.s32.totalorder %s14, 0
      %p69 = por %p67, %p68
      %p70 = scmp.ne.s32.totalorder %s62, %s64
      %p71 = scmp.eq.s32.totalorder %s19, 1
      %p72 = por %p70, %p71
      %p73 = scmp.ne.s32.totalorder %s64, %s65
      %p74 = scmp.eq.s32.totalorder %s19, 0
      %p75 = por %p73, %p74
      %p76 = scmp.ne.s32.totalorder %s64, %s65
      %p77 = scmp.eq.s32.totalorder %s20, 1
      %p78 = por %p76, %p77
      %p80 = scmp.ne.s32.totalorder %s65, %s79
      %p81 = scmp.eq.s32.totalorder %s20, 0
      %p82 = por %p80, %p81
      %s84 = sadd.s32 %s83, 1
      %p87 = scmp.eq.s32.totalorder %s14, 1
      %p88 = scmp.ne.s32.totalorder %s83, %s85
      %p89 = scmp.eq.s32.totalorder %s14, 0
      %p90 = por %p88, %p89
      %p91 = scmp.ne.s32.totalorder %s83, %s85
      %p92 = scmp.eq.s32.totalorder %s19, 1
      %p93 = por %p91, %p92
      %p94 = scmp.ne.s32.totalorder %s85, %s86
      %p95 = scmp.eq.s32.totalorder %s19, 0
      %p96 = por %p94, %p95
      %p97 = scmp.ne.s32.totalorder %s85, %s86
      %p98 = scmp.eq.s32.totalorder %s20, 1
      %p99 = por %p97, %p98
      %p101 = scmp.ne.s32.totalorder %s86, %s100
      %p102 = scmp.eq.s32.totalorder %s20, 0
      %p103 = por %p101, %p102
      %s105 = sadd.s32 %s104, 1
      %p108 = scmp.eq.s32.totalorder %s14, 1
      %p109 = scmp.ne.s32.totalorder %s104, %s106
      %p110 = scmp.eq.s32.totalorder %s14, 0
      %p111 = por %p109, %p110
      %p112 = scmp.ne.s32.totalorder %s104, %s106
      %p113 = scmp.eq.s32.totalorder %s19, 1
      %p114 = por %p112, %p113
      %p115 = scmp.ne.s32.totalorder %s106, %s107
      %p116 = scmp.eq.s32.totalorder %s19, 0
      %p117 = por %p115, %p116
      %p118 = scmp.ne.s32.totalorder %s106, %s107
      %p119 = scmp.eq.s32.totalorder %s20, 1
      %p120 = por %p118, %p119
      %p122 = scmp.ne.s32.totalorder %s107, %s121
      %p123 = scmp.eq.s32.totalorder %s20, 0
      %p124 = por %p122, %p123
      %s125 = ssub.s32 %s21, %s33
      %p126 = scmp.eq.s32.totalorder %s125, 0
      %s128 = sadd.s32 %s127, 1
      %s129 = scalar_select %p126, %s127, %s128
      %p132 = pneg %p126
      %p133 = scmp.eq.s32.totalorder %s14, 1
      %p134 = por %p132, %p133
      %p135 = scmp.ne.s32.totalorder %s127, %s130
      %p136 = scmp.eq.s32.totalorder %s14, 0
      %p137 = por %p135, %p136
      %p138 = scmp.ne.s32.totalorder %s127, %s130
      %p139 = scmp.eq.s32.totalorder %s19, 1
      %p140 = por %p138, %p139
      %p141 = scmp.ne.s32.totalorder %s130, %s131
      %p142 = scmp.eq.s32.totalorder %s19, 0
      %p143 = por %p141, %p142
      %p144 = scmp.ne.s32.totalorder %s130, %s131
      %p145 = scmp.eq.s32.totalorder %s20, 1
      %p146 = por %p144, %p145
      %p148 = scmp.ne.s32.totalorder %s131, %s147
      %p149 = scmp.eq.s32.totalorder %s20, 0
      %p150 = por %p148, %p149
      %p151 = scmp.le.s32.totalorder 1, %s14
      %p152 = scmp.lt.s32.totalorder %s14, 3
      %p153 = pnand %p151, %p152
      %p154 = pneg %p153
      // Predicated region
      $region9: #{tpu_custom_call.1} parent=5 // pred_check
        _
      $region10: #{tpu_custom_call.1} parent=5 // pred_check_branch
        %156 = sbr.rel (%p153) target = $region12
      $region11: #{tpu_custom_call.1} parent=5 // pred_region
        %s157 = ssub.s32 %s14, 1
        // Predicated region
        $region13: #{tpu_custom_call.1} parent=11 // pred_check
          %p158 = pneg %p75
        $region14: #{tpu_custom_call.1} parent=11 // pred_check_branch
          %160 = sbr.rel (%p158) target = $region16
        $region15: #{tpu_custom_call.1} parent=11 // pred_region
          _
        $region16: #{tpu_custom_call.1} parent=11 // pred_fallthru
          _
        // Predicated region
        $region17: #{tpu_custom_call.1} parent=11 // pred_check
          %p161 = pneg %p96
        $region18: #{tpu_custom_call.1} parent=11 // pred_check_branch
          %163 = sbr.rel (%p161) target = $region20
        $region19: #{tpu_custom_call.1} parent=11 // pred_region
          _
        $region20: #{tpu_custom_call.1} parent=11 // pred_fallthru
          _
        // Predicated region
        $region21: #{tpu_custom_call.1} parent=11 // pred_check
          %p164 = pneg %p117
        $region22: #{tpu_custom_call.1} parent=11 // pred_check_branch
          %166 = sbr.rel (%p164) target = $region24
        $region23: #{tpu_custom_call.1} parent=11 // pred_region
          _
        $region24: #{tpu_custom_call.1} parent=11 // pred_fallthru
          _
      $region12: #{tpu_custom_call.1} parent=5 // pred_fallthru
        _
      %p167 = scmp.lt.s32.totalorder %s14, 2
      // Predicated region
      $region25: #{tpu_custom_call.1} parent=5 // pred_check
        %p168 = pneg %p167
      $region26: #{tpu_custom_call.1} parent=5 // pred_check_branch
        %170 = sbr.rel (%p168) target = $region28
      $region27: #{tpu_custom_call.1} parent=5 // pred_region
        // Predicated region
        $region29: #{tpu_custom_call.1} parent=27 // pred_check
          %p171 = pneg %p48
        $region30: #{tpu_custom_call.1} parent=27 // pred_check_branch
          %173 = sbr.rel (%p171) target = $region32
        $region31: #{tpu_custom_call.1} parent=27 // pred_region
          %s174 = sand.u32 %s38, 1
          %s175 = scalar_lea.sflag [#allocation4], %s174
          %s176 = sand.u32 %s38, 1
          %s177 = smul.addr %s176, 32
          %s178 = scalar_lea.vmem [#allocation3], %s177
          %s179 = smul.u32 8, %s21
          %s181 = ssub.s32 512, 512
          %182 = vsyncadd %s175, %s181
          %s183 = smul.addr %s22, 8
          %s184 = sadd.s32 %s179, %s183
          %s185 = smul.addr %s184, 64
          %s186 = scalar_lea.hbm %s0, %s185
          %s188 = sshll.u32 %s178, 4
          %s189 = int_to_ptr.vmem [resolvable:$true] %s188
          %191 = dma.hbm_to_vmem [thread:$0]  %s186, 512, %s189, %s175
        $region32: #{tpu_custom_call.1} parent=27 // pred_fallthru
          _
      $region28: #{tpu_custom_call.1} parent=5 // pred_fallthru
        _
      %p192 = scmp.le.s32.totalorder 1, %s14
      %p193 = scmp.lt.s32.totalorder %s14, 3
      %p194 = pnand %p192, %p193
      %p195 = pneg %p194
      // Predicated region
      $region33: #{tpu_custom_call.1} parent=5 // pred_check
        _
      $region34: #{tpu_custom_call.1} parent=5 // pred_check_branch
        %197 = sbr.rel (%p194) target = $region36
      $region35: #{tpu_custom_call.1} parent=5 // pred_region
        %s198 = ssub.s32 %s14, 1
        %s199 = sand.u32 %s41, 1
        %s200 = scalar_lea.sflag [#allocation4], %s199
        %s201 = sand.u32 %s41, 1
        %s202 = smul.addr %s201, 32
        %s203 = scalar_lea.vmem [#allocation3], %s202
        // Predicated region
        $region37: #{tpu_custom_call.1} parent=35 // pred_check
          %p204 = pneg %p54
        $region38: #{tpu_custom_call.1} parent=35 // pred_check_branch
          %206 = sbr.rel (%p204) target = $region40
        $region39: #{tpu_custom_call.1} parent=35 // pred_region
          %207 = dma.done %s200, 512
        $region40: #{tpu_custom_call.1} parent=35 // pred_fallthru
          _
        %s208 = sand.u32 %s41, 1
        %s209 = scalar_lea.sflag [#allocation4], %s208
        %s210 = sand.u32 %s41, 1
        %s211 = smul.addr %s210, 32
        %s212 = scalar_lea.vmem [#allocation3], %s211
        %p213 = pneg %p54
        %p214 = pneg %p51
        %p215 = pneg %p75
        %p216 = pneg %p72
        %p217 = pneg %p96
        %p218 = pneg %p93
        %p219 = pneg %p117
        %p220 = pneg %p114
        %p221 = pneg %p143
        %p222 = pneg %p140
        %s223 = smul.u32 8, %s23
        %p224 = scmp.eq.s32.totalorder %s24, 0
        // Predicated region
        $region41: #{tpu_custom_call.1} parent=35 // pred_check
          %p225 = pneg %p224
        $region42: #{tpu_custom_call.1} parent=35 // pred_check_branch
          %227 = sbr.rel (%p225) target = $region44
        $region43: #{tpu_custom_call.1} parent=35 // pred_region
          %vm228 = vcmask 64512
          %229 = vst.msk [vmem:[#allocation2] sm:$0xff] %vm228, 0.0
          %230 = vst.msk [vmem:[#allocation2 + $0x8] sm:$0xff] %vm228, 0.0
          %231 = vst.msk [vmem:[#allocation2 + $0x10] sm:$0xff] %vm228, 0.0
          %232 = vst.msk [vmem:[#allocation2 + $0x18] sm:$0xff] %vm228, 0.0
        $region44: #{tpu_custom_call.1} parent=35 // pred_fallthru
          _
        %v233 = vld [vmem:[%s1] sm:$0xff]
        %v234 = vld [vmem:[%s1 + $0x8] sm:$0xff]
        %v235 = vld [vmem:[%s1 + $0x10] sm:$0xff]
        %v236 = vld [vmem:[%s1 + $0x18] sm:$0xff]
        %v237 = vld [vmem:[%s203] sm:$0xff]
        %v238 = vld [vmem:[%s203 + $0x8] sm:$0xff]
        %v239 = vld [vmem:[%s203 + $0x10] sm:$0xff]
        %v240 = vld [vmem:[%s203 + $0x18] sm:$0xff]
        %v245 = vcombine.high %v237, %v237
        %v246 = vcombine.high %v238, %v238
        %v247 = vcombine.high %v239, %v239
        %v248 = vcombine.high %v240, %v240
        %vm249 = vcmask 31744
        %v251 = vsel %vm249, %v233, 0
        %v254 = vsel %vm249, %v234, 0
        %v257 = vsel %vm249, %v235, 0
        %v260 = vsel %vm249, %v236, 0
        %vm262 = vcmask 1043456
        %v263 = vsel %vm262, %v237, 0
        %v265 = vsel %vm262, %v245, 0
        %v267 = vsel %vm262, %v238, 0
        %v269 = vsel %vm262, %v246, 0
        %v271 = vsel %vm262, %v239, 0
        %v273 = vsel %vm262, %v247, 0
        %v275 = vsel %vm262, %v240, 0
        %v277 = vsel %vm262, %v248, 0
        %279 = vmatprep.subr.mxu0 0.0
        %280 = vmatpush1.msra.mxu0 0.0
        %281 = vmatprep.subr.mxu0 0.0
        %282 = vmatpush1.msra.mxu0 0.0
        %283 = vmatprep.subr.mxu0 0.0
        %284 = vmatpush1.msra.mxu0 0.0
        %285 = vmatprep.subr.mxu0 0.0
        %286 = vmatpush1.msra.mxu0 0.0
        %287 = vmatprep.subr.mxu0 0.0
        %288 = vmatpush1.msra.mxu0 0.0
        %289 = vmatprep.subr.mxu0 0.0
        %290 = vmatpush1.msra.mxu0 0.0
        %291 = vmatprep.subr.mxu0 0.0
        %292 = vmatpush1.msra.mxu0 0.0
        %293 = vmatprep.subr.mxu0 0.0
        %294 = vmatpush1.msra.mxu0 0.0
        %295 = vmatprep.subr.mxu0 0.0
        %296 = vmatpush1.msra.mxu0 0.0
        %297 = vmatprep.subr.mxu0 0.0
        %298 = vmatpush1.msra.mxu0 0.0
        %299 = vmatprep.subr.mxu0 0.0
        %300 = vmatpush1.msra.mxu0 0.0
        %301 = vmatprep.subr.mxu0 0.0
        %302 = vmatpush1.msra.mxu0 0.0
        %303 = vmatprep.subr.mxu0 0.0
        %304 = vmatpush1.msra.mxu0 0.0
        %305 = vmatprep.subr.mxu0 0.0
        %306 = vmatpush1.msra.mxu0 0.0
        %307 = vmatprep.subr.mxu0 0.0
        %308 = vmatpush1.msra.mxu0 0.0
        %309 = vmatprep.subr.mxu0 %v265
        %310 = vmatpush1.msra.mxu0 %v263
        %311 = vmatprep.subr.mxu0 0.0
        %312 = vmatpush2.msra.mxu0 0.0
        %313 = vmatprep.subr.mxu0 0.0
        %314 = vmatpush2.msra.mxu0 0.0
        %315 = vmatprep.subr.mxu0 0.0
        %316 = vmatpush2.msra.mxu0 0.0
        %317 = vmatprep.subr.mxu0 0.0
        %318 = vmatpush2.msra.mxu0 0.0
        %319 = vmatprep.subr.mxu0 0.0
        %320 = vmatpush2.msra.mxu0 0.0
        %321 = vmatprep.subr.mxu0 0.0
        %322 = vmatpush2.msra.mxu0 0.0
        %323 = vmatprep.subr.mxu0 0.0
        %324 = vmatpush2.msra.mxu0 0.0
        %325 = vmatprep.subr.mxu0 0.0
        %326 = vmatpush2.msra.mxu0 0.0
        %327 = vmatprep.subr.mxu0 0.0
        %328 = vmatpush2.msra.mxu0 0.0
        %329 = vmatprep.subr.mxu0 0.0
        %330 = vmatpush2.msra.mxu0 0.0
        %331 = vmatprep.subr.mxu0 0.0
        %332 = vmatpush2.msra.mxu0 0.0
        %333 = vmatprep.subr.mxu0 0.0
        %334 = vmatpush2.msra.mxu0 0.0
        %335 = vmatprep.subr.mxu0 0.0
        %336 = vmatpush2.msra.mxu0 0.0
        %337 = vmatprep.subr.mxu0 0.0
        %338 = vmatpush2.msra.mxu0 0.0
        %339 = vmatprep.subr.mxu0 0.0
        %340 = vmatpush2.msra.mxu0 0.0
        %341 = vmatprep.subr.mxu0 0.0
        %342 = vmatpush2.msra.mxu0 0.0
        %343 = vmatprep.mubr.f32.mxu0 0.0
        %344 = vmatmul.mubr.f32.gmra.mxu0 %v251
        %v345 = vpop.f32.mrf.mxu0
        %v346 = vadd.f32 0.0, %v345
        %v347 = vpop.f32.mrf.mxu0
        %v348 = vadd.f32 0.0, %v347
        %349 = vmatprep.mubr.f32.mxu0 0.0
        %350 = vmatmul.mubr.f32.gmra.mxu0 %v254
        %v351 = vpop.f32.mrf.mxu0
        %v352 = vadd.f32 0.0, %v351
        %v353 = vpop.f32.mrf.mxu0
        %v354 = vadd.f32 0.0, %v353
        %355 = vmatprep.mubr.f32.mxu0 0.0
        %356 = vmatmul.mubr.f32.gmra.mxu0 %v257
        %v357 = vpop.f32.mrf.mxu0
        %v358 = vadd.f32 0.0, %v357
        %v359 = vpop.f32.mrf.mxu0
        %v360 = vadd.f32 0.0, %v359
        %361 = vmatprep.mubr.f32.mxu0 0.0
        %362 = vmatmul.mubr.f32.gmra.mxu0 %v260
        %v363 = vpop.f32.mrf.mxu0
        %v364 = vadd.f32 0.0, %v363
        %v365 = vpop.f32.mrf.mxu0
        %v366 = vadd.f32 0.0, %v365
        %367 = vdwg.mxu0
        %368 = vmatprep.subr.mxu0 0.0
        %369 = vmatpush1.msra.mxu0 0.0
        %370 = vmatprep.subr.mxu0 0.0
        %371 = vmatpush1.msra.mxu0 0.0
        %372 = vmatprep.subr.mxu0 0.0
        %373 = vmatpush1.msra.mxu0 0.0
        %374 = vmatprep.subr.mxu0 0.0
        %375 = vmatpush1.msra.mxu0 0.0
        %376 = vmatprep.subr.mxu0 0.0
        %377 = vmatpush1.msra.mxu0 0.0
        %378 = vmatprep.subr.mxu0 0.0
        %379 = vmatpush1.msra.mxu0 0.0
        %380 = vmatprep.subr.mxu0 0.0
        %381 = vmatpush1.msra.mxu0 0.0
        %382 = vmatprep.subr.mxu0 0.0
        %383 = vmatpush1.msra.mxu0 0.0
        %384 = vmatprep.subr.mxu0 0.0
        %385 = vmatpush1.msra.mxu0 0.0
        %386 = vmatprep.subr.mxu0 0.0
        %387 = vmatpush1.msra.mxu0 0.0
        %388 = vmatprep.subr.mxu0 0.0
        %389 = vmatpush1.msra.mxu0 0.0
        %390 = vmatprep.subr.mxu0 0.0
        %391 = vmatpush1.msra.mxu0 0.0
        %392 = vmatprep.subr.mxu0 0.0
        %393 = vmatpush1.msra.mxu0 0.0
        %394 = vmatprep.subr.mxu0 0.0
        %395 = vmatpush1.msra.mxu0 0.0
        %396 = vmatprep.subr.mxu0 0.0
        %397 = vmatpush1.msra.mxu0 0.0
        %398 = vmatprep.subr.mxu0 %v269
        %399 = vmatpush1.msra.mxu0 %v267
        %400 = vmatprep.subr.mxu0 0.0
        %401 = vmatpush2.msra.mxu0 0.0
        %402 = vmatprep.subr.mxu0 0.0
        %403 = vmatpush2.msra.mxu0 0.0
        %404 = vmatprep.subr.mxu0 0.0
        %405 = vmatpush2.msra.mxu0 0.0
        %406 = vmatprep.subr.mxu0 0.0
        %407 = vmatpush2.msra.mxu0 0.0
        %408 = vmatprep.subr.mxu0 0.0
        %409 = vmatpush2.msra.mxu0 0.0
        %410 = vmatprep.subr.mxu0 0.0
        %411 = vmatpush2.msra.mxu0 0.0
        %412 = vmatprep.subr.mxu0 0.0
        %413 = vmatpush2.msra.mxu0 0.0
        %414 = vmatprep.subr.mxu0 0.0
        %415 = vmatpush2.msra.mxu0 0.0
        %416 = vmatprep.subr.mxu0 0.0
        %417 = vmatpush2.msra.mxu0 0.0
        %418 = vmatprep.subr.mxu0 0.0
        %419 = vmatpush2.msra.mxu0 0.0
        %420 = vmatprep.subr.mxu0 0.0
        %421 = vmatpush2.msra.mxu0 0.0
        %422 = vmatprep.subr.mxu0 0.0
        %423 = vmatpush2.msra.mxu0 0.0
        %424 = vmatprep.subr.mxu0 0.0
        %425 = vmatpush2.msra.mxu0 0.0
        %426 = vmatprep.subr.mxu0 0.0
        %427 = vmatpush2.msra.mxu0 0.0
        %428 = vmatprep.subr.mxu0 0.0
        %429 = vmatpush2.msra.mxu0 0.0
        %430 = vmatprep.subr.mxu0 0.0
        %431 = vmatpush2.msra.mxu0 0.0
        %432 = vmatprep.mubr.f32.mxu0 0.0
        %433 = vmatmul.mubr.f32.gmra.mxu0 %v251
        %v434 = vpop.f32.mrf.mxu0
        %v435 = vadd.f32 0.0, %v434
        %v436 = vpop.f32.mrf.mxu0
        %v437 = vadd.f32 0.0, %v436
        %438 = vmatprep.mubr.f32.mxu0 0.0
        %439 = vmatmul.mubr.f32.gmra.mxu0 %v254
        %v440 = vpop.f32.mrf.mxu0
        %v441 = vadd.f32 0.0, %v440
        %v442 = vpop.f32.mrf.mxu0
        %v443 = vadd.f32 0.0, %v442
        %444 = vmatprep.mubr.f32.mxu0 0.0
        %445 = vmatmul.mubr.f32.gmra.mxu0 %v257
        %v446 = vpop.f32.mrf.mxu0
        %v447 = vadd.f32 0.0, %v446
        %v448 = vpop.f32.mrf.mxu0
        %v449 = vadd.f32 0.0, %v448
        %450 = vmatprep.mubr.f32.mxu0 0.0
        %451 = vmatmul.mubr.f32.gmra.mxu0 %v260
        %v452 = vpop.f32.mrf.mxu0
        %v453 = vadd.f32 0.0, %v452
        %v454 = vpop.f32.mrf.mxu0
        %v455 = vadd.f32 0.0, %v454
        %456 = vdwg.mxu0
        %457 = vmatprep.subr.mxu0 0.0
        %458 = vmatpush1.msra.mxu0 0.0
        %459 = vmatprep.subr.mxu0 0.0
        %460 = vmatpush1.msra.mxu0 0.0
        %461 = vmatprep.subr.mxu0 0.0
        %462 = vmatpush1.msra.mxu0 0.0
        %463 = vmatprep.subr.mxu0 0.0
        %464 = vmatpush1.msra.mxu0 0.0
        %465 = vmatprep.subr.mxu0 0.0
        %466 = vmatpush1.msra.mxu0 0.0
        %467 = vmatprep.subr.mxu0 0.0
        %468 = vmatpush1.msra.mxu0 0.0
        %469 = vmatprep.subr.mxu0 0.0
        %470 = vmatpush1.msra.mxu0 0.0
        %471 = vmatprep.subr.mxu0 0.0
        %472 = vmatpush1.msra.mxu0 0.0
        %473 = vmatprep.subr.mxu0 0.0
        %474 = vmatpush1.msra.mxu0 0.0
        %475 = vmatprep.subr.mxu0 0.0
        %476 = vmatpush1.msra.mxu0 0.0
        %477 = vmatprep.subr.mxu0 0.0
        %478 = vmatpush1.msra.mxu0 0.0
        %479 = vmatprep.subr.mxu0 0.0
        %480 = vmatpush1.msra.mxu0 0.0
        %481 = vmatprep.subr.mxu0 0.0
        %482 = vmatpush1.msra.mxu0 0.0
        %483 = vmatprep.subr.mxu0 0.0
        %484 = vmatpush1.msra.mxu0 0.0
        %485 = vmatprep.subr.mxu0 0.0
        %486 = vmatpush1.msra.mxu0 0.0
        %487 = vmatprep.subr.mxu0 %v273
        %488 = vmatpush1.msra.mxu0 %v271
        %489 = vmatprep.subr.mxu0 0.0
        %490 = vmatpush2.msra.mxu0 0.0
        %491 = vmatprep.subr.mxu0 0.0
        %492 = vmatpush2.msra.mxu0 0.0
        %493 = vmatprep.subr.mxu0 0.0
        %494 = vmatpush2.msra.mxu0 0.0
        %495 = vmatprep.subr.mxu0 0.0
        %496 = vmatpush2.msra.mxu0 0.0
        %497 = vmatprep.subr.mxu0 0.0
        %498 = vmatpush2.msra.mxu0 0.0
        %499 = vmatprep.subr.mxu0 0.0
        %500 = vmatpush2.msra.mxu0 0.0
        %501 = vmatprep.subr.mxu0 0.0
        %502 = vmatpush2.msra.mxu0 0.0
        %503 = vmatprep.subr.mxu0 0.0
        %504 = vmatpush2.msra.mxu0 0.0
        %505 = vmatprep.subr.mxu0 0.0
        %506 = vmatpush2.msra.mxu0 0.0
        %507 = vmatprep.subr.mxu0 0.0
        %508 = vmatpush2.msra.mxu0 0.0
        %509 = vmatprep.subr.mxu0 0.0
        %510 = vmatpush2.msra.mxu0 0.0
        %511 = vmatprep.subr.mxu0 0.0
        %512 = vmatpush2.msra.mxu0 0.0
        %513 = vmatprep.subr.mxu0 0.0
        %514 = vmatpush2.msra.mxu0 0.0
        %515 = vmatprep.subr.mxu0 0.0
        %516 = vmatpush2.msra.mxu0 0.0
        %517 = vmatprep.subr.mxu0 0.0
        %518 = vmatpush2.msra.mxu0 0.0
        %519 = vmatprep.subr.mxu0 0.0
        %520 = vmatpush2.msra.mxu0 0.0
        %521 = vmatprep.mubr.f32.mxu0 0.0
        %522 = vmatmul.mubr.f32.gmra.mxu0 %v251
        %v523 = vpop.f32.mrf.mxu0
        %v524 = vadd.f32 0.0, %v523
        %v525 = vpop.f32.mrf.mxu0
        %v526 = vadd.f32 0.0, %v525
        %527 = vmatprep.mubr.f32.mxu0 0.0
        %528 = vmatmul.mubr.f32.gmra.mxu0 %v254
        %v529 = vpop.f32.mrf.mxu0
        %v530 = vadd.f32 0.0, %v529
        %v531 = vpop.f32.mrf.mxu0
        %v532 = vadd.f32 0.0, %v531
        %533 = vmatprep.mubr.f32.mxu0 0.0
        %534 = vmatmul.mubr.f32.gmra.mxu0 %v257
        %v535 = vpop.f32.mrf.mxu0
        %v536 = vadd.f32 0.0, %v535
        %v537 = vpop.f32.mrf.mxu0
        %v538 = vadd.f32 0.0, %v537
        %539 = vmatprep.mubr.f32.mxu0 0.0
        %540 = vmatmul.mubr.f32.gmra.mxu0 %v260
        %v541 = vpop.f32.mrf.mxu0
        %v542 = vadd.f32 0.0, %v541
        %v543 = vpop.f32.mrf.mxu0
        %v544 = vadd.f32 0.0, %v543
        %545 = vdwg.mxu0
        %546 = vmatprep.subr.mxu0 0.0
        %547 = vmatpush1.msra.mxu0 0.0
        %548 = vmatprep.subr.mxu0 0.0
        %549 = vmatpush1.msra.mxu0 0.0
        %550 = vmatprep.subr.mxu0 0.0
        %551 = vmatpush1.msra.mxu0 0.0
        %552 = vmatprep.subr.mxu0 0.0
        %553 = vmatpush1.msra.mxu0 0.0
        %554 = vmatprep.subr.mxu0 0.0
        %555 = vmatpush1.msra.mxu0 0.0
        %556 = vmatprep.subr.mxu0 0.0
        %557 = vmatpush1.msra.mxu0 0.0
        %558 = vmatprep.subr.mxu0 0.0
        %559 = vmatpush1.msra.mxu0 0.0
        %560 = vmatprep.subr.mxu0 0.0
        %561 = vmatpush1.msra.mxu0 0.0
        %562 = vmatprep.subr.mxu0 0.0
        %563 = vmatpush1.msra.mxu0 0.0
        %564 = vmatprep.subr.mxu0 0.0
        %565 = vmatpush1.msra.mxu0 0.0
        %566 = vmatprep.subr.mxu0 0.0
        %567 = vmatpush1.msra.mxu0 0.0
        %568 = vmatprep.subr.mxu0 0.0
        %569 = vmatpush1.msra.mxu0 0.0
        %570 = vmatprep.subr.mxu0 0.0
        %571 = vmatpush1.msra.mxu0 0.0
        %572 = vmatprep.subr.mxu0 0.0
        %573 = vmatpush1.msra.mxu0 0.0
        %574 = vmatprep.subr.mxu0 0.0
        %575 = vmatpush1.msra.mxu0 0.0
        %576 = vmatprep.subr.mxu0 %v277
        %577 = vmatpush1.msra.mxu0 %v275
        %578 = vmatprep.subr.mxu0 0.0
        %579 = vmatpush2.msra.mxu0 0.0
        %580 = vmatprep.subr.mxu0 0.0
        %581 = vmatpush2.msra.mxu0 0.0
        %582 = vmatprep.subr.mxu0 0.0
        %583 = vmatpush2.msra.mxu0 0.0
        %584 = vmatprep.subr.mxu0 0.0
        %585 = vmatpush2.msra.mxu0 0.0
        %586 = vmatprep.subr.mxu0 0.0
        %587 = vmatpush2.msra.mxu0 0.0
        %588 = vmatprep.subr.mxu0 0.0
        %589 = vmatpush2.msra.mxu0 0.0
        %590 = vmatprep.subr.mxu0 0.0
        %591 = vmatpush2.msra.mxu0 0.0
        %592 = vmatprep.subr.mxu0 0.0
        %593 = vmatpush2.msra.mxu0 0.0
        %594 = vmatprep.subr.mxu0 0.0
        %595 = vmatpush2.msra.mxu0 0.0
        %596 = vmatprep.subr.mxu0 0.0
        %597 = vmatpush2.msra.mxu0 0.0
        %598 = vmatprep.subr.mxu0 0.0
        %599 = vmatpush2.msra.mxu0 0.0
        %600 = vmatprep.subr.mxu0 0.0
        %601 = vmatpush2.msra.mxu0 0.0
        %602 = vmatprep.subr.mxu0 0.0
        %603 = vmatpush2.msra.mxu0 0.0
        %604 = vmatprep.subr.mxu0 0.0
        %605 = vmatpush2.msra.mxu0 0.0
        %606 = vmatprep.subr.mxu0 0.0
        %607 = vmatpush2.msra.mxu0 0.0
        %608 = vmatprep.subr.mxu0 0.0
        %609 = vmatpush2.msra.mxu0 0.0
        %610 = vmatprep.mubr.f32.mxu0 0.0
        %611 = vmatmul.mubr.f32.gmra.mxu0 %v251
        %v612 = vpop.f32.mrf.mxu0
        %v613 = vadd.f32 0.0, %v612
        %v614 = vpop.f32.mrf.mxu0
        %v615 = vadd.f32 0.0, %v614
        %616 = vmatprep.mubr.f32.mxu0 0.0
        %617 = vmatmul.mubr.f32.gmra.mxu0 %v254
        %v618 = vpop.f32.mrf.mxu0
        %v619 = vadd.f32 0.0, %v618
        %v620 = vpop.f32.mrf.mxu0
        %v621 = vadd.f32 0.0, %v620
        %622 = vmatprep.mubr.f32.mxu0 0.0
        %623 = vmatmul.mubr.f32.gmra.mxu0 %v257
        %v624 = vpop.f32.mrf.mxu0
        %v625 = vadd.f32 0.0, %v624
        %v626 = vpop.f32.mrf.mxu0
        %v627 = vadd.f32 0.0, %v626
        %628 = vmatprep.mubr.f32.mxu0 0.0
        %629 = vmatmul.mubr.f32.gmra.mxu0 %v260
        %v630 = vpop.f32.mrf.mxu0
        %v631 = vadd.f32 0.0, %v630
        %v632 = vpop.f32.mrf.mxu0
        %v633 = vadd.f32 0.0, %v632
        %634 = vdwg.mxu0
        %v635 = vmax.f32 %v346, 0.0
        %v636 = vmax.f32 %v348, 0.0
        %v637 = vmax.f32 %v435, 0.0
        %v638 = vmax.f32 %v437, 0.0
        %v639 = vmax.f32 %v524, 0.0
        %v640 = vmax.f32 %v526, 0.0
        %v641 = vmax.f32 %v613, 0.0
        %v642 = vmax.f32 %v615, 0.0
        %v643 = vmax.f32 %v352, 0.0
        %v644 = vmax.f32 %v354, 0.0
        %v645 = vmax.f32 %v441, 0.0
        %v646 = vmax.f32 %v443, 0.0
        %v647 = vmax.f32 %v530, 0.0
        %v648 = vmax.f32 %v532, 0.0
        %v649 = vmax.f32 %v619, 0.0
        %v650 = vmax.f32 %v621, 0.0
        %v651 = vmax.f32 %v358, 0.0
        %v652 = vmax.f32 %v360, 0.0
        %v653 = vmax.f32 %v447, 0.0
        %v654 = vmax.f32 %v449, 0.0
        %v655 = vmax.f32 %v536, 0.0
        %v656 = vmax.f32 %v538, 0.0
        %v657 = vmax.f32 %v625, 0.0
        %v658 = vmax.f32 %v627, 0.0
        %v659 = vmax.f32 %v364, 0.0
        %v660 = vmax.f32 %v366, 0.0
        %v661 = vmax.f32 %v453, 0.0
        %v662 = vmax.f32 %v455, 0.0
        %v663 = vmax.f32 %v542, 0.0
        %v664 = vmax.f32 %v544, 0.0
        %v665 = vmax.f32 %v631, 0.0
        %v666 = vmax.f32 %v633, 0.0
        %v667 = vld [vmem:[#allocation2] sm:$0xff]
        %v668 = vld [vmem:[#allocation2 + $0x8] sm:$0xff]
        %v669 = vld [vmem:[#allocation2 + $0x10] sm:$0xff]
        %v670 = vld [vmem:[#allocation2 + $0x18] sm:$0xff]
        %v671 = vcombine.low %v635, %v637
        %v672 = vcombine.high %v635, %v637
        %v674 = vunpack.c.l.s4 1983009808
        %v675 = vunpack.c.0.s8 %v674
        %v676 = vlaneseq
        %v677 = vshrl.u32 %v676, 7
        %v678 = vsub.s32 %v675, %v677
        %v679 = vrot.slane %v671, %v678
        %v681 = vunpack.c.l.s4 1983009808
        %v682 = vunpack.c.0.s8 %v681
        %v683 = vlaneseq
        %v684 = vshrl.u32 %v683, 7
        %v685 = vsub.s32 %v682, %v684
        %v686 = vrot.slane %v672, %v685
        %v687 = vcombine.low %v636, %v638
        %v688 = vcombine.high %v636, %v638
        %v690 = vunpack.c.l.s4 1983009808
        %v691 = vunpack.c.0.s8 %v690
        %v692 = vlaneseq
        %v693 = vshrl.u32 %v692, 7
        %v694 = vsub.s32 %v691, %v693
        %v695 = vrot.slane %v687, %v694
        %v697 = vunpack.c.l.s4 1983009808
        %v698 = vunpack.c.0.s8 %v697
        %v699 = vlaneseq
        %v700 = vshrl.u32 %v699, 7
        %v701 = vsub.s32 %v698, %v700
        %v702 = vrot.slane %v688, %v701
        %v703 = vcombine.low %v639, %v641
        %v704 = vcombine.high %v639, %v641
        %v706 = vunpack.c.l.s4 1983009808
        %v707 = vunpack.c.0.s8 %v706
        %v708 = vlaneseq
        %v709 = vshrl.u32 %v708, 7
        %v710 = vsub.s32 %v707, %v709
        %v711 = vrot.slane %v703, %v710
        %v713 = vunpack.c.l.s4 1983009808
        %v714 = vunpack.c.0.s8 %v713
        %v715 = vlaneseq
        %v716 = vshrl.u32 %v715, 7
        %v717 = vsub.s32 %v714, %v716
        %v718 = vrot.slane %v704, %v717
        %v719 = vcombine.low %v640, %v642
        %v720 = vcombine.high %v640, %v642
        %v722 = vunpack.c.l.s4 1983009808
        %v723 = vunpack.c.0.s8 %v722
        %v724 = vlaneseq
        %v725 = vshrl.u32 %v724, 7
        %v726 = vsub.s32 %v723, %v725
        %v727 = vrot.slane %v719, %v726
        %v729 = vunpack.c.l.s4 1983009808
        %v730 = vunpack.c.0.s8 %v729
        %v731 = vlaneseq
        %v732 = vshrl.u32 %v731, 7
        %v733 = vsub.s32 %v730, %v732
        %v734 = vrot.slane %v720, %v733
        %v735 = vcombine.low %v679, %v695
        %v736 = vcombine.high %v679, %v695
        %v738 = vunpack.c.l.s4 1934713408
        %v739 = vunpack.c.0.s8 %v738
        %v740 = vlaneseq
        %v741 = vshrl.u32 %v740, 7
        %v742 = vsub.s32 %v739, %v741
        %v743 = vrot.slane %v735, %v742
        %v745 = vunpack.c.l.s4 1934713408
        %v746 = vunpack.c.0.s8 %v745
        %v747 = vlaneseq
        %v748 = vshrl.u32 %v747, 7
        %v749 = vsub.s32 %v746, %v748
        %v750 = vrot.slane %v736, %v749
        %v751 = vcombine.low %v686, %v702
        %v752 = vcombine.high %v686, %v702
        %v754 = vunpack.c.l.s4 1934713408
        %v755 = vunpack.c.0.s8 %v754
        %v756 = vlaneseq
        %v757 = vshrl.u32 %v756, 7
        %v758 = vsub.s32 %v755, %v757
        %v759 = vrot.slane %v751, %v758
        %v761 = vunpack.c.l.s4 1934713408
        %v762 = vunpack.c.0.s8 %v761
        %v763 = vlaneseq
        %v764 = vshrl.u32 %v763, 7
        %v765 = vsub.s32 %v762, %v764
        %v766 = vrot.slane %v752, %v765
        %v767 = vcombine.low %v711, %v727
        %v768 = vcombine.high %v711, %v727
        %v770 = vunpack.c.l.s4 1934713408
        %v771 = vunpack.c.0.s8 %v770
        %v772 = vlaneseq
        %v773 = vshrl.u32 %v772, 7
        %v774 = vsub.s32 %v771, %v773
        %v775 = vrot.slane %v767, %v774
        %v777 = vunpack.c.l.s4 1934713408
        %v778 = vunpack.c.0.s8 %v777
        %v779 = vlaneseq
        %v780 = vshrl.u32 %v779, 7
        %v781 = vsub.s32 %v778, %v780
        %v782 = vrot.slane %v768, %v781
        %v783 = vcombine.low %v718, %v734
        %v784 = vcombine.high %v718, %v734
        %v786 = vunpack.c.l.s4 1934713408
        %v787 = vunpack.c.0.s8 %v786
        %v788 = vlaneseq
        %v789 = vshrl.u32 %v788, 7
        %v790 = vsub.s32 %v787, %v789
        %v791 = vrot.slane %v783, %v790
        %v793 = vunpack.c.l.s4 1934713408
        %v794 = vunpack.c.0.s8 %v793
        %v795 = vlaneseq
        %v796 = vshrl.u32 %v795, 7
        %v797 = vsub.s32 %v794, %v796
        %v798 = vrot.slane %v784, %v797
        %v799 = vcombine.low %v743, %v775
        %v800 = vcombine.high %v743, %v775
        %v801 = vcombine.low %v750, %v782
        %v802 = vcombine.high %v750, %v782
        %v803 = vcombine.low %v759, %v791
        %v804 = vcombine.high %v759, %v791
        %v805 = vcombine.low %v766, %v798
        %v806 = vcombine.high %v766, %v798
        %v807 = vcombine.low %v643, %v645
        %v808 = vcombine.high %v643, %v645
        %v810 = vunpack.c.l.s4 1983009808
        %v811 = vunpack.c.0.s8 %v810
        %v812 = vlaneseq
        %v813 = vshrl.u32 %v812, 7
        %v814 = vsub.s32 %v811, %v813
        %v815 = vrot.slane %v807, %v814
        %v817 = vunpack.c.l.s4 1983009808
        %v818 = vunpack.c.0.s8 %v817
        %v819 = vlaneseq
        %v820 = vshrl.u32 %v819, 7
        %v821 = vsub.s32 %v818, %v820
        %v822 = vrot.slane %v808, %v821
        %v823 = vcombine.low %v644, %v646
        %v824 = vcombine.high %v644, %v646
        %v826 = vunpack.c.l.s4 1983009808
        %v827 = vunpack.c.0.s8 %v826
        %v828 = vlaneseq
        %v829 = vshrl.u32 %v828, 7
        %v830 = vsub.s32 %v827, %v829
        %v831 = vrot.slane %v823, %v830
        %v833 = vunpack.c.l.s4 1983009808
        %v834 = vunpack.c.0.s8 %v833
        %v835 = vlaneseq
        %v836 = vshrl.u32 %v835, 7
        %v837 = vsub.s32 %v834, %v836
        %v838 = vrot.slane %v824, %v837
        %v839 = vcombine.low %v647, %v649
        %v840 = vcombine.high %v647, %v649
        %v842 = vunpack.c.l.s4 1983009808
        %v843 = vunpack.c.0.s8 %v842
        %v844 = vlaneseq
        %v845 = vshrl.u32 %v844, 7
        %v846 = vsub.s32 %v843, %v845
        %v847 = vrot.slane %v839, %v846
        %v849 = vunpack.c.l.s4 1983009808
        %v850 = vunpack.c.0.s8 %v849
        %v851 = vlaneseq
        %v852 = vshrl.u32 %v851, 7
        %v853 = vsub.s32 %v850, %v852
        %v854 = vrot.slane %v840, %v853
        %v855 = vcombine.low %v648, %v650
        %v856 = vcombine.high %v648, %v650
        %v858 = vunpack.c.l.s4 1983009808
        %v859 = vunpack.c.0.s8 %v858
        %v860 = vlaneseq
        %v861 = vshrl.u32 %v860, 7
        %v862 = vsub.s32 %v859, %v861
        %v863 = vrot.slane %v855, %v862
        %v865 = vunpack.c.l.s4 1983009808
        %v866 = vunpack.c.0.s8 %v865
        %v867 = vlaneseq
        %v868 = vshrl.u32 %v867, 7
        %v869 = vsub.s32 %v866, %v868
        %v870 = vrot.slane %v856, %v869
        %v871 = vcombine.low %v815, %v831
        %v872 = vcombine.high %v815, %v831
        %v874 = vunpack.c.l.s4 1934713408
        %v875 = vunpack.c.0.s8 %v874
        %v876 = vlaneseq
        %v877 = vshrl.u32 %v876, 7
        %v878 = vsub.s32 %v875, %v877
        %v879 = vrot.slane %v871, %v878
        %v881 = vunpack.c.l.s4 1934713408
        %v882 = vunpack.c.0.s8 %v881
        %v883 = vlaneseq
        %v884 = vshrl.u32 %v883, 7
        %v885 = vsub.s32 %v882, %v884
        %v886 = vrot.slane %v872, %v885
        %v887 = vcombine.low %v822, %v838
        %v888 = vcombine.high %v822, %v838
        %v890 = vunpack.c.l.s4 1934713408
        %v891 = vunpack.c.0.s8 %v890
        %v892 = vlaneseq
        %v893 = vshrl.u32 %v892, 7
        %v894 = vsub.s32 %v891, %v893
        %v895 = vrot.slane %v887, %v894
        %v897 = vunpack.c.l.s4 1934713408
        %v898 = vunpack.c.0.s8 %v897
        %v899 = vlaneseq
        %v900 = vshrl.u32 %v899, 7
        %v901 = vsub.s32 %v898, %v900
        %v902 = vrot.slane %v888, %v901
        %v903 = vcombine.low %v847, %v863
        %v904 = vcombine.high %v847, %v863
        %v906 = vunpack.c.l.s4 1934713408
        %v907 = vunpack.c.0.s8 %v906
        %v908 = vlaneseq
        %v909 = vshrl.u32 %v908, 7
        %v910 = vsub.s32 %v907, %v909
        %v911 = vrot.slane %v903, %v910
        %v913 = vunpack.c.l.s4 1934713408
        %v914 = vunpack.c.0.s8 %v913
        %v915 = vlaneseq
        %v916 = vshrl.u32 %v915, 7
        %v917 = vsub.s32 %v914, %v916
        %v918 = vrot.slane %v904, %v917
        %v919 = vcombine.low %v854, %v870
        %v920 = vcombine.high %v854, %v870
        %v922 = vunpack.c.l.s4 1934713408
        %v923 = vunpack.c.0.s8 %v922
        %v924 = vlaneseq
        %v925 = vshrl.u32 %v924, 7
        %v926 = vsub.s32 %v923, %v925
        %v927 = vrot.slane %v919, %v926
        %v929 = vunpack.c.l.s4 1934713408
        %v930 = vunpack.c.0.s8 %v929
        %v931 = vlaneseq
        %v932 = vshrl.u32 %v931, 7
        %v933 = vsub.s32 %v930, %v932
        %v934 = vrot.slane %v920, %v933
        %v935 = vcombine.low %v879, %v911
        %v936 = vcombine.high %v879, %v911
        %v937 = vcombine.low %v886, %v918
        %v938 = vcombine.high %v886, %v918
        %v939 = vcombine.low %v895, %v927
        %v940 = vcombine.high %v895, %v927
        %v941 = vcombine.low %v902, %v934
        %v942 = vcombine.high %v902, %v934
        %v943 = vcombine.low %v651, %v653
        %v944 = vcombine.high %v651, %v653
        %v946 = vunpack.c.l.s4 1983009808
        %v947 = vunpack.c.0.s8 %v946
        %v948 = vlaneseq
        %v949 = vshrl.u32 %v948, 7
        %v950 = vsub.s32 %v947, %v949
        %v951 = vrot.slane %v943, %v950
        %v953 = vunpack.c.l.s4 1983009808
        %v954 = vunpack.c.0.s8 %v953
        %v955 = vlaneseq
        %v956 = vshrl.u32 %v955, 7
        %v957 = vsub.s32 %v954, %v956
        %v958 = vrot.slane %v944, %v957
        %v959 = vcombine.low %v652, %v654
        %v960 = vcombine.high %v652, %v654
        %v962 = vunpack.c.l.s4 1983009808
        %v963 = vunpack.c.0.s8 %v962
        %v964 = vlaneseq
        %v965 = vshrl.u32 %v964, 7
        %v966 = vsub.s32 %v963, %v965
        %v967 = vrot.slane %v959, %v966
        %v969 = vunpack.c.l.s4 1983009808
        %v970 = vunpack.c.0.s8 %v969
        %v971 = vlaneseq
        %v972 = vshrl.u32 %v971, 7
        %v973 = vsub.s32 %v970, %v972
        %v974 = vrot.slane %v960, %v973
        %v975 = vcombine.low %v655, %v657
        %v976 = vcombine.high %v655, %v657
        %v978 = vunpack.c.l.s4 1983009808
        %v979 = vunpack.c.0.s8 %v978
        %v980 = vlaneseq
        %v981 = vshrl.u32 %v980, 7
        %v982 = vsub.s32 %v979, %v981
        %v983 = vrot.slane %v975, %v982
        %v985 = vunpack.c.l.s4 1983009808
        %v986 = vunpack.c.0.s8 %v985
        %v987 = vlaneseq
        %v988 = vshrl.u32 %v987, 7
        %v989 = vsub.s32 %v986, %v988
        %v990 = vrot.slane %v976, %v989
        %v991 = vcombine.low %v656, %v658
        %v992 = vcombine.high %v656, %v658
        %v994 = vunpack.c.l.s4 1983009808
        %v995 = vunpack.c.0.s8 %v994
        %v996 = vlaneseq
        %v997 = vshrl.u32 %v996, 7
        %v998 = vsub.s32 %v995, %v997
        %v999 = vrot.slane %v991, %v998
        %v1001 = vunpack.c.l.s4 1983009808
        %v1002 = vunpack.c.0.s8 %v1001
        %v1003 = vlaneseq
        %v1004 = vshrl.u32 %v1003, 7
        %v1005 = vsub.s32 %v1002, %v1004
        %v1006 = vrot.slane %v992, %v1005
        %v1007 = vcombine.low %v951, %v967
        %v1008 = vcombine.high %v951, %v967
        %v1010 = vunpack.c.l.s4 1934713408
        %v1011 = vunpack.c.0.s8 %v1010
        %v1012 = vlaneseq
        %v1013 = vshrl.u32 %v1012, 7
        %v1014 = vsub.s32 %v1011, %v1013
        %v1015 = vrot.slane %v1007, %v1014
        %v1017 = vunpack.c.l.s4 1934713408
        %v1018 = vunpack.c.0.s8 %v1017
        %v1019 = vlaneseq
        %v1020 = vshrl.u32 %v1019, 7
        %v1021 = vsub.s32 %v1018, %v1020
        %v1022 = vrot.slane %v1008, %v1021
        %v1023 = vcombine.low %v958, %v974
        %v1024 = vcombine.high %v958, %v974
        %v1026 = vunpack.c.l.s4 1934713408
        %v1027 = vunpack.c.0.s8 %v1026
        %v1028 = vlaneseq
        %v1029 = vshrl.u32 %v1028, 7
        %v1030 = vsub.s32 %v1027, %v1029
        %v1031 = vrot.slane %v1023, %v1030
        %v1033 = vunpack.c.l.s4 1934713408
        %v1034 = vunpack.c.0.s8 %v1033
        %v1035 = vlaneseq
        %v1036 = vshrl.u32 %v1035, 7
        %v1037 = vsub.s32 %v1034, %v1036
        %v1038 = vrot.slane %v1024, %v1037
        %v1039 = vcombine.low %v983, %v999
        %v1040 = vcombine.high %v983, %v999
        %v1042 = vunpack.c.l.s4 1934713408
        %v1043 = vunpack.c.0.s8 %v1042
        %v1044 = vlaneseq
        %v1045 = vshrl.u32 %v1044, 7
        %v1046 = vsub.s32 %v1043, %v1045
        %v1047 = vrot.slane %v1039, %v1046
        %v1049 = vunpack.c.l.s4 1934713408
        %v1050 = vunpack.c.0.s8 %v1049
        %v1051 = vlaneseq
        %v1052 = vshrl.u32 %v1051, 7
        %v1053 = vsub.s32 %v1050, %v1052
        %v1054 = vrot.slane %v1040, %v1053
        %v1055 = vcombine.low %v990, %v1006
        %v1056 = vcombine.high %v990, %v1006
        %v1058 = vunpack.c.l.s4 1934713408
        %v1059 = vunpack.c.0.s8 %v1058
        %v1060 = vlaneseq
        %v1061 = vshrl.u32 %v1060, 7
        %v1062 = vsub.s32 %v1059, %v1061
        %v1063 = vrot.slane %v1055, %v1062
        %v1065 = vunpack.c.l.s4 1934713408
        %v1066 = vunpack.c.0.s8 %v1065
        %v1067 = vlaneseq
        %v1068 = vshrl.u32 %v1067, 7
        %v1069 = vsub.s32 %v1066, %v1068
        %v1070 = vrot.slane %v1056, %v1069
        %v1071 = vcombine.low %v1015, %v1047
        %v1072 = vcombine.high %v1015, %v1047
        %v1073 = vcombine.low %v1022, %v1054
        %v1074 = vcombine.high %v1022, %v1054
        %v1075 = vcombine.low %v1031, %v1063
        %v1076 = vcombine.high %v1031, %v1063
        %v1077 = vcombine.low %v1038, %v1070
        %v1078 = vcombine.high %v1038, %v1070
        %v1079 = vcombine.low %v659, %v661
        %v1080 = vcombine.high %v659, %v661
        %v1082 = vunpack.c.l.s4 1983009808
        %v1083 = vunpack.c.0.s8 %v1082
        %v1084 = vlaneseq
        %v1085 = vshrl.u32 %v1084, 7
        %v1086 = vsub.s32 %v1083, %v1085
        %v1087 = vrot.slane %v1079, %v1086
        %v1089 = vunpack.c.l.s4 1983009808
        %v1090 = vunpack.c.0.s8 %v1089
        %v1091 = vlaneseq
        %v1092 = vshrl.u32 %v1091, 7
        %v1093 = vsub.s32 %v1090, %v1092
        %v1094 = vrot.slane %v1080, %v1093
        %v1095 = vcombine.low %v660, %v662
        %v1096 = vcombine.high %v660, %v662
        %v1098 = vunpack.c.l.s4 1983009808
        %v1099 = vunpack.c.0.s8 %v1098
        %v1100 = vlaneseq
        %v1101 = vshrl.u32 %v1100, 7
        %v1102 = vsub.s32 %v1099, %v1101
        %v1103 = vrot.slane %v1095, %v1102
        %v1105 = vunpack.c.l.s4 1983009808
        %v1106 = vunpack.c.0.s8 %v1105
        %v1107 = vlaneseq
        %v1108 = vshrl.u32 %v1107, 7
        %v1109 = vsub.s32 %v1106, %v1108
        %v1110 = vrot.slane %v1096, %v1109
        %v1111 = vcombine.low %v663, %v665
        %v1112 = vcombine.high %v663, %v665
        %v1114 = vunpack.c.l.s4 1983009808
        %v1115 = vunpack.c.0.s8 %v1114
        %v1116 = vlaneseq
        %v1117 = vshrl.u32 %v1116, 7
        %v1118 = vsub.s32 %v1115, %v1117
        %v1119 = vrot.slane %v1111, %v1118
        %v1121 = vunpack.c.l.s4 1983009808
        %v1122 = vunpack.c.0.s8 %v1121
        %v1123 = vlaneseq
        %v1124 = vshrl.u32 %v1123, 7
        %v1125 = vsub.s32 %v1122, %v1124
        %v1126 = vrot.slane %v1112, %v1125
        %v1127 = vcombine.low %v664, %v666
        %v1128 = vcombine.high %v664, %v666
        %v1130 = vunpack.c.l.s4 1983009808
        %v1131 = vunpack.c.0.s8 %v1130
        %v1132 = vlaneseq
        %v1133 = vshrl.u32 %v1132, 7
        %v1134 = vsub.s32 %v1131, %v1133
        %v1135 = vrot.slane %v1127, %v1134
        %v1137 = vunpack.c.l.s4 1983009808
        %v1138 = vunpack.c.0.s8 %v1137
        %v1139 = vlaneseq
        %v1140 = vshrl.u32 %v1139, 7
        %v1141 = vsub.s32 %v1138, %v1140
        %v1142 = vrot.slane %v1128, %v1141
        %v1143 = vcombine.low %v1087, %v1103
        %v1144 = vcombine.high %v1087, %v1103
        %v1146 = vunpack.c.l.s4 1934713408
        %v1147 = vunpack.c.0.s8 %v1146
        %v1148 = vlaneseq
        %v1149 = vshrl.u32 %v1148, 7
        %v1150 = vsub.s32 %v1147, %v1149
        %v1151 = vrot.slane %v1143, %v1150
        %v1153 = vunpack.c.l.s4 1934713408
        %v1154 = vunpack.c.0.s8 %v1153
        %v1155 = vlaneseq
        %v1156 = vshrl.u32 %v1155, 7
        %v1157 = vsub.s32 %v1154, %v1156
        %v1158 = vrot.slane %v1144, %v1157
        %v1159 = vcombine.low %v1094, %v1110
        %v1160 = vcombine.high %v1094, %v1110
        %v1162 = vunpack.c.l.s4 1934713408
        %v1163 = vunpack.c.0.s8 %v1162
        %v1164 = vlaneseq
        %v1165 = vshrl.u32 %v1164, 7
        %v1166 = vsub.s32 %v1163, %v1165
        %v1167 = vrot.slane %v1159, %v1166
        %v1169 = vunpack.c.l.s4 1934713408
        %v1170 = vunpack.c.0.s8 %v1169
        %v1171 = vlaneseq
        %v1172 = vshrl.u32 %v1171, 7
        %v1173 = vsub.s32 %v1170, %v1172
        %v1174 = vrot.slane %v1160, %v1173
        %v1175 = vcombine.low %v1119, %v1135
        %v1176 = vcombine.high %v1119, %v1135
        %v1178 = vunpack.c.l.s4 1934713408
        %v1179 = vunpack.c.0.s8 %v1178
        %v1180 = vlaneseq
        %v1181 = vshrl.u32 %v1180, 7
        %v1182 = vsub.s32 %v1179, %v1181
        %v1183 = vrot.slane %v1175, %v1182
        %v1185 = vunpack.c.l.s4 1934713408
        %v1186 = vunpack.c.0.s8 %v1185
        %v1187 = vlaneseq
        %v1188 = vshrl.u32 %v1187, 7
        %v1189 = vsub.s32 %v1186, %v1188
        %v1190 = vrot.slane %v1176, %v1189
        %v1191 = vcombine.low %v1126, %v1142
        %v1192 = vcombine.high %v1126, %v1142
        %v1194 = vunpack.c.l.s4 1934713408
        %v1195 = vunpack.c.0.s8 %v1194
        %v1196 = vlaneseq
        %v1197 = vshrl.u32 %v1196, 7
        %v1198 = vsub.s32 %v1195, %v1197
        %v1199 = vrot.slane %v1191, %v1198
        %v1201 = vunpack.c.l.s4 1934713408
        %v1202 = vunpack.c.0.s8 %v1201
        %v1203 = vlaneseq
        %v1204 = vshrl.u32 %v1203, 7
        %v1205 = vsub.s32 %v1202, %v1204
        %v1206 = vrot.slane %v1192, %v1205
        %v1207 = vcombine.low %v1151, %v1183
        %v1208 = vcombine.high %v1151, %v1183
        %v1209 = vcombine.low %v1158, %v1190
        %v1210 = vcombine.high %v1158, %v1190
        %v1211 = vcombine.low %v1167, %v1199
        %v1212 = vcombine.high %v1167, %v1199
        %v1213 = vcombine.low %v1174, %v1206
        %v1214 = vcombine.high %v1174, %v1206
        %1215 = vadd.xlane.f32.xlu0 %v799
        %v1216 = vpop.xlane.xlu0 %1215
        %1217 = vadd.xlane.f32.xlu0 %v800
        %v1218 = vpop.xlane.xlu0 %1217
        %1219 = vadd.xlane.f32.xlu0 %v801
        %v1220 = vpop.xlane.xlu0 %1219
        %1221 = vadd.xlane.f32.xlu0 %v802
        %v1222 = vpop.xlane.xlu0 %1221
        %1223 = vadd.xlane.f32.xlu0 %v803
        %v1224 = vpop.xlane.xlu0 %1223
        %1225 = vadd.xlane.f32.xlu0 %v804
        %v1226 = vpop.xlane.xlu0 %1225
        %1227 = vadd.xlane.f32.xlu0 %v805
        %v1228 = vpop.xlane.xlu0 %1227
        %1229 = vadd.xlane.f32.xlu0 %v806
        %v1230 = vpop.xlane.xlu0 %1229
        %1231 = vadd.xlane.f32.xlu0 %v935
        %v1232 = vpop.xlane.xlu0 %1231
        %1233 = vadd.xlane.f32.xlu0 %v936
        %v1234 = vpop.xlane.xlu0 %1233
        %1235 = vadd.xlane.f32.xlu0 %v937
        %v1236 = vpop.xlane.xlu0 %1235
        %1237 = vadd.xlane.f32.xlu0 %v938
        %v1238 = vpop.xlane.xlu0 %1237
        %1239 = vadd.xlane.f32.xlu0 %v939
        %v1240 = vpop.xlane.xlu0 %1239
        %1241 = vadd.xlane.f32.xlu0 %v940
        %v1242 = vpop.xlane.xlu0 %1241
        %1243 = vadd.xlane.f32.xlu0 %v941
        %v1244 = vpop.xlane.xlu0 %1243
        %1245 = vadd.xlane.f32.xlu0 %v942
        %v1246 = vpop.xlane.xlu0 %1245
        %1247 = vadd.xlane.f32.xlu0 %v1071
        %v1248 = vpop.xlane.xlu0 %1247
        %1249 = vadd.xlane.f32.xlu0 %v1072
        %v1250 = vpop.xlane.xlu0 %1249
        %1251 = vadd.xlane.f32.xlu0 %v1073
        %v1252 = vpop.xlane.xlu0 %1251
        %1253 = vadd.xlane.f32.xlu0 %v1074
        %v1254 = vpop.xlane.xlu0 %1253
        %1255 = vadd.xlane.f32.xlu0 %v1075
        %v1256 = vpop.xlane.xlu0 %1255
        %1257 = vadd.xlane.f32.xlu0 %v1076
        %v1258 = vpop.xlane.xlu0 %1257
        %1259 = vadd.xlane.f32.xlu0 %v1077
        %v1260 = vpop.xlane.xlu0 %1259
        %1261 = vadd.xlane.f32.xlu0 %v1078
        %v1262 = vpop.xlane.xlu0 %1261
        %1263 = vadd.xlane.f32.xlu0 %v1207
        %v1264 = vpop.xlane.xlu0 %1263
        %1265 = vadd.xlane.f32.xlu0 %v1208
        %v1266 = vpop.xlane.xlu0 %1265
        %1267 = vadd.xlane.f32.xlu0 %v1209
        %v1268 = vpop.xlane.xlu0 %1267
        %1269 = vadd.xlane.f32.xlu0 %v1210
        %v1270 = vpop.xlane.xlu0 %1269
        %1271 = vadd.xlane.f32.xlu0 %v1211
        %v1272 = vpop.xlane.xlu0 %1271
        %1273 = vadd.xlane.f32.xlu0 %v1212
        %v1274 = vpop.xlane.xlu0 %1273
        %1275 = vadd.xlane.f32.xlu0 %v1213
        %v1276 = vpop.xlane.xlu0 %1275
        %1277 = vadd.xlane.f32.xlu0 %v1214
        %v1278 = vpop.xlane.xlu0 %1277
        %v1311 = vlaneseq
        %v1312 = vand.u32 %v1311, 127
        %v1313 = vlaneseq
        %v1314 = vshrl.u32 %v1313, 7
        %v1315 = vsub.s32 %v1312, %v1314
        %v1316 = vrot.slane %v1216, %v1315
        %v1317 = vlaneseq
        %v1318 = vshrl.u32 %v1317, 7
        %v1319 = vsub.s32 %v1312, %v1318
        %v1320 = vrot.slane %v1218, %v1319
        %v1321 = vlaneseq
        %v1322 = vshrl.u32 %v1321, 7
        %v1323 = vsub.s32 %v1312, %v1322
        %v1324 = vrot.slane %v1220, %v1323
        %v1325 = vlaneseq
        %v1326 = vshrl.u32 %v1325, 7
        %v1327 = vsub.s32 %v1312, %v1326
        %v1328 = vrot.slane %v1222, %v1327
        %v1329 = vlaneseq
        %v1330 = vshrl.u32 %v1329, 7
        %v1331 = vsub.s32 %v1312, %v1330
        %v1332 = vrot.slane %v1224, %v1331
        %v1333 = vlaneseq
        %v1334 = vshrl.u32 %v1333, 7
        %v1335 = vsub.s32 %v1312, %v1334
        %v1336 = vrot.slane %v1226, %v1335
        %v1337 = vlaneseq
        %v1338 = vshrl.u32 %v1337, 7
        %v1339 = vsub.s32 %v1312, %v1338
        %v1340 = vrot.slane %v1228, %v1339
        %v1341 = vlaneseq
        %v1342 = vshrl.u32 %v1341, 7
        %v1343 = vsub.s32 %v1312, %v1342
        %v1344 = vrot.slane %v1230, %v1343
        %v1345 = vlaneseq
        %v1346 = vshrl.u32 %v1345, 7
        %v1347 = vsub.s32 %v1312, %v1346
        %v1348 = vrot.slane %v1232, %v1347
        %v1349 = vlaneseq
        %v1350 = vshrl.u32 %v1349, 7
        %v1351 = vsub.s32 %v1312, %v1350
        %v1352 = vrot.slane %v1234, %v1351
        %v1353 = vlaneseq
        %v1354 = vshrl.u32 %v1353, 7
        %v1355 = vsub.s32 %v1312, %v1354
        %v1356 = vrot.slane %v1236, %v1355
        %v1357 = vlaneseq
        %v1358 = vshrl.u32 %v1357, 7
        %v1359 = vsub.s32 %v1312, %v1358
        %v1360 = vrot.slane %v1238, %v1359
        %v1361 = vlaneseq
        %v1362 = vshrl.u32 %v1361, 7
        %v1363 = vsub.s32 %v1312, %v1362
        %v1364 = vrot.slane %v1240, %v1363
        %v1365 = vlaneseq
        %v1366 = vshrl.u32 %v1365, 7
        %v1367 = vsub.s32 %v1312, %v1366
        %v1368 = vrot.slane %v1242, %v1367
        %v1369 = vlaneseq
        %v1370 = vshrl.u32 %v1369, 7
        %v1371 = vsub.s32 %v1312, %v1370
        %v1372 = vrot.slane %v1244, %v1371
        %v1373 = vlaneseq
        %v1374 = vshrl.u32 %v1373, 7
        %v1375 = vsub.s32 %v1312, %v1374
        %v1376 = vrot.slane %v1246, %v1375
        %v1377 = vlaneseq
        %v1378 = vshrl.u32 %v1377, 7
        %v1379 = vsub.s32 %v1312, %v1378
        %v1380 = vrot.slane %v1248, %v1379
        %v1381 = vlaneseq
        %v1382 = vshrl.u32 %v1381, 7
        %v1383 = vsub.s32 %v1312, %v1382
        %v1384 = vrot.slane %v1250, %v1383
        %v1385 = vlaneseq
        %v1386 = vshrl.u32 %v1385, 7
        %v1387 = vsub.s32 %v1312, %v1386
        %v1388 = vrot.slane %v1252, %v1387
        %v1389 = vlaneseq
        %v1390 = vshrl.u32 %v1389, 7
        %v1391 = vsub.s32 %v1312, %v1390
        %v1392 = vrot.slane %v1254, %v1391
        %v1393 = vlaneseq
        %v1394 = vshrl.u32 %v1393, 7
        %v1395 = vsub.s32 %v1312, %v1394
        %v1396 = vrot.slane %v1256, %v1395
        %v1397 = vlaneseq
        %v1398 = vshrl.u32 %v1397, 7
        %v1399 = vsub.s32 %v1312, %v1398
        %v1400 = vrot.slane %v1258, %v1399
        %v1401 = vlaneseq
        %v1402 = vshrl.u32 %v1401, 7
        %v1403 = vsub.s32 %v1312, %v1402
        %v1404 = vrot.slane %v1260, %v1403
        %v1405 = vlaneseq
        %v1406 = vshrl.u32 %v1405, 7
        %v1407 = vsub.s32 %v1312, %v1406
        %v1408 = vrot.slane %v1262, %v1407
        %v1409 = vlaneseq
        %v1410 = vshrl.u32 %v1409, 7
        %v1411 = vsub.s32 %v1312, %v1410
        %v1412 = vrot.slane %v1264, %v1411
        %v1413 = vlaneseq
        %v1414 = vshrl.u32 %v1413, 7
        %v1415 = vsub.s32 %v1312, %v1414
        %v1416 = vrot.slane %v1266, %v1415
        %v1417 = vlaneseq
        %v1418 = vshrl.u32 %v1417, 7
        %v1419 = vsub.s32 %v1312, %v1418
        %v1420 = vrot.slane %v1268, %v1419
        %v1421 = vlaneseq
        %v1422 = vshrl.u32 %v1421, 7
        %v1423 = vsub.s32 %v1312, %v1422
        %v1424 = vrot.slane %v1270, %v1423
        %v1425 = vlaneseq
        %v1426 = vshrl.u32 %v1425, 7
        %v1427 = vsub.s32 %v1312, %v1426
        %v1428 = vrot.slane %v1272, %v1427
        %v1429 = vlaneseq
        %v1430 = vshrl.u32 %v1429, 7
        %v1431 = vsub.s32 %v1312, %v1430
        %v1432 = vrot.slane %v1274, %v1431
        %v1433 = vlaneseq
        %v1434 = vshrl.u32 %v1433, 7
        %v1435 = vsub.s32 %v1312, %v1434
        %v1436 = vrot.slane %v1276, %v1435
        %v1437 = vlaneseq
        %v1438 = vshrl.u32 %v1437, 7
        %v1439 = vsub.s32 %v1312, %v1438
        %v1440 = vrot.slane %v1278, %v1439
        %vm1441 = vcmask 1041409
        %v1442 = vsel %vm1441, %v1320, %v1316
        %vm1443 = vcmask 1042434
        %v1444 = vsel %vm1443, %v1324, %v1442
        %vm1445 = vcmask 1043459
        %v1446 = vsel %vm1445, %v1328, %v1444
        %vm1447 = vcmask 1044484
        %v1448 = vsel %vm1447, %v1332, %v1446
        %vm1449 = vcmask 1045509
        %v1450 = vsel %vm1449, %v1336, %v1448
        %vm1451 = vcmask 1046534
        %v1452 = vsel %vm1451, %v1340, %v1450
        %vm1453 = vcmask 1047559
        %v1454 = vsel %vm1453, %v1344, %v1452
        %v1455 = vsel %vm1441, %v1352, %v1348
        %v1456 = vsel %vm1443, %v1356, %v1455
        %v1457 = vsel %vm1445, %v1360, %v1456
        %v1458 = vsel %vm1447, %v1364, %v1457
        %v1459 = vsel %vm1449, %v1368, %v1458
        %v1460 = vsel %vm1451, %v1372, %v1459
        %v1461 = vsel %vm1453, %v1376, %v1460
        %v1462 = vsel %vm1441, %v1384, %v1380
        %v1463 = vsel %vm1443, %v1388, %v1462
        %v1464 = vsel %vm1445, %v1392, %v1463
        %v1465 = vsel %vm1447, %v1396, %v1464
        %v1466 = vsel %vm1449, %v1400, %v1465
        %v1467 = vsel %vm1451, %v1404, %v1466
        %v1468 = vsel %vm1453, %v1408, %v1467
        %v1469 = vsel %vm1441, %v1416, %v1412
        %v1470 = vsel %vm1443, %v1420, %v1469
        %v1471 = vsel %vm1445, %v1424, %v1470
        %v1472 = vsel %vm1447, %v1428, %v1471
        %v1473 = vsel %vm1449, %v1432, %v1472
        %v1474 = vsel %vm1451, %v1436, %v1473
        %v1475 = vsel %vm1453, %v1440, %v1474
        %v1480 = vadd.f32 %v667, %v1454
        %v1481 = vadd.f32 %v668, %v1461
        %v1482 = vadd.f32 %v669, %v1468
        %v1483 = vadd.f32 %v670, %v1475
        %vm1484 = vcmask 64512
        %1485 = vst.msk [vmem:[#allocation2] sm:$0xff] %vm1484, %v1480
        %1486 = vst.msk [vmem:[#allocation2 + $0x8] sm:$0xff] %vm1484, %v1481
        %1487 = vst.msk [vmem:[#allocation2 + $0x10] sm:$0xff] %vm1484, %v1482
        %1488 = vst.msk [vmem:[#allocation2 + $0x18] sm:$0xff] %vm1484, %v1483
        %p1489 = scmp.eq.s32.totalorder %s24, 1
        // Predicated region
        $region45: #{tpu_custom_call.1} parent=35 // pred_check
          %p1490 = pneg %p1489
        $region46: #{tpu_custom_call.1} parent=35 // pred_check_branch
          %1492 = sbr.rel (%p1490) target = $region48
        $region47: #{tpu_custom_call.1} parent=35 // pred_region
          %v1493 = vld [vmem:[#allocation2] sm:$0xff]
          %v1494 = vld [vmem:[#allocation2 + $0x8] sm:$0xff]
          %v1495 = vld [vmem:[#allocation2 + $0x10] sm:$0xff]
          %v1496 = vld [vmem:[#allocation2 + $0x18] sm:$0xff]
          %v1497 = vmul.f32 %v1493, 0.00390625
          %v1498 = vmul.f32 %v1494, 0.00390625
          %v1499 = vmul.f32 %v1495, 0.00390625
          %v1500 = vmul.f32 %v1496, 0.00390625
          %1501 = vxpose.xlu0.b32.start [1/16] %v1497, 128
          %1502 = vxpose.xlu0.b32.cont [2/16] %v1498, 128
          %1503 = vxpose.xlu0.b32.cont [3/16] %v1499, 128
          %1504 = vxpose.xlu0.b32.cont [4/16] %v1500, 128
          %1505 = vxpose.xlu0.b32.cont [5/16] 0.0, 128
          %1506 = vxpose.xlu0.b32.cont [6/16] 0.0, 128
          %1507 = vxpose.xlu0.b32.cont [7/16] 0.0, 128
          %1508 = vxpose.xlu0.b32.cont [8/16] 0.0, 128
          %1509 = vxpose.xlu0.b32.cont [9/16] 0.0, 128
          %1510 = vxpose.xlu0.b32.cont [10/16] 0.0, 128
          %1511 = vxpose.xlu0.b32.cont [11/16] 0.0, 128
          %1512 = vxpose.xlu0.b32.cont [12/16] 0.0, 128
          %1513 = vxpose.xlu0.b32.cont [13/16] 0.0, 128
          %1514 = vxpose.xlu0.b32.cont [14/16] 0.0, 128
          %1515 = vxpose.xlu0.b32.cont [15/16] 0.0, 128
          %1516 = vxpose.xlu0.b32.end [16/16] 0.0, 128
          %v1517 = vpop.trf.xlu0
          %v1518 = vpop.trf.xlu0
          %v1519 = vpop.trf.xlu0
          %v1520 = vpop.trf.xlu0
          %v1521 = vpop.trf.xlu0
          %v1522 = vpop.trf.xlu0
          %v1523 = vpop.trf.xlu0
          %v1524 = vpop.trf.xlu0
          %v1525 = vpop.trf.xlu0
          %v1526 = vpop.trf.xlu0
          %v1527 = vpop.trf.xlu0
          %v1528 = vpop.trf.xlu0
          %v1529 = vpop.trf.xlu0
          %v1530 = vpop.trf.xlu0
          %v1531 = vpop.trf.xlu0
          %v1532 = vpop.trf.xlu0
          %v1533 = vld [vmem:[%s2] sm:$0xff]
          %v1534 = vld [vmem:[%s2 + $0x8] sm:$0xff]
          %v1535 = vld [vmem:[%s2 + $0x10] sm:$0xff]
          %v1536 = vld [vmem:[%s2 + $0x18] sm:$0xff]
          %v1537 = vld [vmem:[%s3] sm:$0x1]
          %v1539 = vlaneseq
          %v1540 = vshrl.u32 %v1539, 7
          %v1541 = vsub.s32 0, %v1540
          %v1542 = vrot.slane %v1537, %v1541
          %vm1544 = vcmask 261120
          %v1546 = vsel %vm1544, %v1517, 0
          %1548 = vmatprep.subr.mxu0 0.0
          %1549 = vmatpush1.msra.mxu0 0.0
          %1550 = vmatprep.subr.mxu0 0.0
          %1551 = vmatpush1.msra.mxu0 0.0
          %1552 = vmatprep.subr.mxu0 0.0
          %1553 = vmatpush1.msra.mxu0 0.0
          %1554 = vmatprep.subr.mxu0 0.0
          %1555 = vmatpush1.msra.mxu0 0.0
          %1556 = vmatprep.subr.mxu0 0.0
          %1557 = vmatpush1.msra.mxu0 0.0
          %1558 = vmatprep.subr.mxu0 0.0
          %1559 = vmatpush1.msra.mxu0 0.0
          %1560 = vmatprep.subr.mxu0 0.0
          %1561 = vmatpush1.msra.mxu0 0.0
          %1562 = vmatprep.subr.mxu0 0.0
          %1563 = vmatpush1.msra.mxu0 0.0
          %1564 = vmatprep.subr.mxu0 0.0
          %1565 = vmatpush1.msra.mxu0 0.0
          %1566 = vmatprep.subr.mxu0 0.0
          %1567 = vmatpush1.msra.mxu0 0.0
          %1568 = vmatprep.subr.mxu0 0.0
          %1569 = vmatpush1.msra.mxu0 0.0
          %1570 = vmatprep.subr.mxu0 0.0
          %1571 = vmatpush1.msra.mxu0 0.0
          %1572 = vmatprep.subr.mxu0 0.0
          %1573 = vmatpush1.msra.mxu0 %v1536
          %1574 = vmatprep.subr.mxu0 0.0
          %1575 = vmatpush1.msra.mxu0 %v1535
          %1576 = vmatprep.subr.mxu0 0.0
          %1577 = vmatpush1.msra.mxu0 %v1534
          %1578 = vmatprep.subr.mxu0 0.0
          %1579 = vmatpush1.msra.mxu0 %v1533
          %1580 = vmatprep.subr.mxu0 0.0
          %1581 = vmatpush2.msra.mxu0 0.0
          %1582 = vmatprep.subr.mxu0 0.0
          %1583 = vmatpush2.msra.mxu0 0.0
          %1584 = vmatprep.subr.mxu0 0.0
          %1585 = vmatpush2.msra.mxu0 0.0
          %1586 = vmatprep.subr.mxu0 0.0
          %1587 = vmatpush2.msra.mxu0 0.0
          %1588 = vmatprep.subr.mxu0 0.0
          %1589 = vmatpush2.msra.mxu0 0.0
          %1590 = vmatprep.subr.mxu0 0.0
          %1591 = vmatpush2.msra.mxu0 0.0
          %1592 = vmatprep.subr.mxu0 0.0
          %1593 = vmatpush2.msra.mxu0 0.0
          %1594 = vmatprep.subr.mxu0 0.0
          %1595 = vmatpush2.msra.mxu0 0.0
          %1596 = vmatprep.subr.mxu0 0.0
          %1597 = vmatpush2.msra.mxu0 0.0
          %1598 = vmatprep.subr.mxu0 0.0
          %1599 = vmatpush2.msra.mxu0 0.0
          %1600 = vmatprep.subr.mxu0 0.0
          %1601 = vmatpush2.msra.mxu0 0.0
          %1602 = vmatprep.subr.mxu0 0.0
          %1603 = vmatpush2.msra.mxu0 0.0
          %1604 = vmatprep.subr.mxu0 0.0
          %1605 = vmatpush2.msra.mxu0 0.0
          %1606 = vmatprep.subr.mxu0 0.0
          %1607 = vmatpush2.msra.mxu0 0.0
          %1608 = vmatprep.subr.mxu0 0.0
          %1609 = vmatpush2.msra.mxu0 0.0
          %1610 = vmatprep.subr.mxu0 0.0
          %1611 = vmatpush2.msra.mxu0 0.0
          %1612 = vmatprep.mubr.f32.mxu0 0.0
          %1613 = vmatmul.mubr.f32.gmra.mxu0 %v1546
          %v1614 = vpop.f32.mrf.mxu0
          %v1615 = vadd.f32 %v1542, %v1614
          %v1616 = vpop.f32.mrf.mxu0
          %1617 = vdwg.mxu0
          %v1618 = vmul.f32 %v1615, %v1615
          %v1619 = vsel %vm1544, %v1618, 0.0
          %1620 = vadd.xlane.f32.xlu0 %v1619
          %v1621 = vpop.xlane.xlu0 %1620
          %v1622 = vmax.f32 %v1621, 1e-24
          %v1623 = vrsqrt.pop %v1622
          %v1624 = vmul.f32 %v1615, %v1623
          %1625 = vst.msk [vmem:[#allocation6] sm:$0xff] %vm1544, %v1624
        $region48: #{tpu_custom_call.1} parent=35 // pred_fallthru
          _
        // Predicated region
        $region49: #{tpu_custom_call.1} parent=35 // pred_check
          %p1626 = pneg %p140
        $region50: #{tpu_custom_call.1} parent=35 // pred_check_branch
          %1628 = sbr.rel (%p1626) target = $region52
        $region51: #{tpu_custom_call.1} parent=35 // pred_region
          %s1630 = ssub.s32 128, 128
          %1631 = vsyncadd [#allocation5], %s1630
          %s1632 = smul.addr %s23, 128
          %s1633 = scalar_lea.hbm %s4, %s1632
          %s1635 = sshll.u32 [#allocation6], 4
          %s1636 = int_to_ptr.vmem [resolvable:$true] %s1635
          %1638 = dma.vmem_to_hbm [thread:$0]  %s1636, 128, %s1633, [#allocation5]
        $region52: #{tpu_custom_call.1} parent=35 // pred_fallthru
          _
        // Predicated region
        $region53: #{tpu_custom_call.1} parent=35 // pred_check
          %p1639 = pneg %p140
        $region54: #{tpu_custom_call.1} parent=35 // pred_check_branch
          %1641 = sbr.rel (%p1639) target = $region56
        $region55: #{tpu_custom_call.1} parent=35 // pred_region
          %1642 = dma.done [#allocation5], 128
        $region56: #{tpu_custom_call.1} parent=35 // pred_fallthru
          _
      $region36: #{tpu_custom_call.1} parent=5 // pred_fallthru
        _
      %p1643 = scmp.le.s32.totalorder 2, %s14
      // Predicated region
      $region57: #{tpu_custom_call.1} parent=5 // pred_check
        %p1644 = pneg %p1643
      $region58: #{tpu_custom_call.1} parent=5 // pred_check_branch
        %1646 = sbr.rel (%p1644) target = $region60
      $region59: #{tpu_custom_call.1} parent=5 // pred_region
        %s1647 = ssub.s32 %s14, 2
      $region60: #{tpu_custom_call.1} parent=5 // pred_fallthru
        _
    $region6: #{tpu_custom_call.1} parent=1 // loop_footer
      %s18 = sadd.s32 1, %s14
    $region7: #{tpu_custom_call.1} parent=1 // loop_footer_branch
      %13 = sbr.rel target = $region3
    $region8: #{tpu_custom_call.1} parent=1 // loop_exit
      _
    %1648 = vsyncpa [#allocation4], 1
    %s1649 = scalar_lea.sflag [#allocation4], 1
    %1650 = vsyncpa %s1649, 1
    %1651 = vsyncpa [#allocation5], 1
    %s1652 = scalar_lea.sflag [#allocation5], 1
    %1653 = vsyncpa %s1652, 1

</llo_original>
